<compile_context>
chip_gen: v6e
topology: v6e:2x2x1
jax: 0.10.0
libtpu: 0.0.40
codegen_flags: <defaults>
</compile_context>

<pallas_src>
import functools

import jax
import jax.numpy as jnp
from jax import lax
from jax.experimental import pallas as pl
from jax.experimental.pallas import tpu as pltpu


def _vmem_limit_bytes():
    """Generation-aware scoped-VMEM limit (half of physical VMEM)."""
    try:
        cap = int(pltpu.get_tpu_info().vmem_capacity_bytes)
    except Exception:
        cap = 64 * 1024 * 1024          # conservative (v7x-sized) fallback
    return max(cap // 2, 16 * 1024 * 1024)


_VMEM_LIMIT = _vmem_limit_bytes()


def _pick_tiles(S, B, D, vmem_limit_bytes, batch_tile=None, seq_tile=None):
    """Choose (b_blk, s_tile) with B % b_blk == 0 and S % s_tile == 0."""
    if batch_tile is not None:
        assert B % batch_tile == 0, "batch_tile must divide batch"
        b_blk = batch_tile
    else:
        # Grow the batch tile first (each contiguous HBM burst is b_blk*D*itemsize
        # bytes), but keep >= 2 parallel batch tiles when divisors allow so v7x's
        # second TensorCore gets work.
        cands = [c for c in (64, 32, 16, 8) if B % c == 0]
        if not cands:
            # TODO(synk): pad/mask ragged batches (B % 8 != 0) so v7x still sees
            # >= 2 parallel tiles; for now fall back to the full batch.
            cands = [B]
        pref = [c for c in cands if B // c >= 2]
        b_blk = pref[0] if pref else cands[0]

    if seq_tile is not None:
        assert S % seq_tile == 0, "seq_tile must divide seq_len"
        return b_blk, seq_tile

    # Per-buffer M-tile budget in f32-equivalent bytes (in-kernel math is f32,
    # so budget 4 B/elem regardless of the HBM dtype).  Leave headroom for the
    # double-buffered input, in-kernel temps and the resident alpha block.
    # TODO(synk): for very long S, stream alpha out via a seq-blocked out spec
    # (+ per-chunk max / den outputs) so no resident buffer scales with S.
    resident = 3 * b_blk * S * 4
    budget = max((vmem_limit_bytes - resident) // 6, 128 * 1024)
    max_rows = max(8, budget // (b_blk * D * 4))
    if S <= max_rows:
        return b_blk, S

    divs = set()
    d = 1
    while d * d <= S:
        if S % d == 0:
            divs.add(d)
            divs.add(S // d)
        d += 1
    fitting = [x for x in divs if x <= max_rows]
    if not fitting:
        # TODO(synk): mask a ragged tail tile instead of falling back to full S.
        return b_blk, S
    # Prefer multiples of 128 (lane-dense unmasked stores), then multiples of 8.
    s_tile = max(fitting, key=lambda x: (x % 128 == 0, x % 8 == 0, x))
    return b_blk, s_tile


def _make_kernel(s_tile, n_seq, use_mxu):
    def kernel(m_ref, w_ref, pool_ref, alpha_ref, max_run, den_run, chunk_max, acc):
        # m_ref     : (s_tile, b_blk, D)       M tile, native seq-major layout
        # w_ref     : (D, 1) if use_mxu else (1, D)
        # pool_ref  : (b_blk, D)               output, resident across seq tiles
        # alpha_ref : (b_blk, n_seq, s_tile)   output, resident across seq tiles
        # max_run   : (b_blk, 1) f32           running softmax max
        # den_run   : (b_blk, 1) f32           running softmax denominator
        # chunk_max : (b_blk, n_seq, 1) f32    running max used for each chunk
        # acc       : (b_blk, D) f32           running weighted sum
        s_idx = pl.program_id(1)
        b_blk, d = m_ref.shape[1], m_ref.shape[2]

        @pl.when(s_idx == 0)
        def _init():
            max_run[...] = jnp.full(max_run.shape, -jnp.inf, jnp.float32)
            den_run[...] = jnp.zeros(den_run.shape, jnp.float32)
            acc[...] = jnp.zeros(acc.shape, jnp.float32)

        m = m_ref[...]                                 # (s_tile, b_blk, D), input dtype
        m_f32 = m.astype(jnp.float32)                  # no-op for f32 inputs
        # TODO(synk): keep the pooling multiplies in bf16 on v6e/v7x (bf16 VALU)
        # and only accumulate in f32, to skip this cast for bf16 inputs.

        if use_mxu:
            # D-contraction on the (otherwise idle) MXU.  Reshapes are
            # layout-free because b_blk % 8 == 0; the (rows, 1) result is
            # sublane-major, so p below broadcasts over the D lanes with a
            # single lane-broadcast and no relayout of m.
            scores = jnp.dot(
                m.reshape(s_tile * b_blk, d),
                w_ref[...].astype(m.dtype),            # (D, 1)
                preferred_element_type=jnp.float32,
                precision=lax.Precision.HIGHEST,
            ).reshape(s_tile, b_blk, 1)
        else:
            # Ragged batch tile (b_blk % 8 != 0): VPU lane-reduce fallback.
            w_row = w_ref[...].astype(jnp.float32)     # (1, D)
            scores = jnp.sum(m_f32 * w_row[None, :, :], axis=-1)[:, :, None]

        # Online (flash-style) softmax over the seq axis; per-batch stats stay
        # sublane-major (b_blk, 1).
        tile_max = jnp.max(scores, axis=0)                       # (b_blk, 1)
        new_max = jnp.maximum(max_run[...], tile_max)            # (b_blk, 1)
        corr = jnp.exp(max_run[...] - new_max)                   # (b_blk, 1)
        p = jnp.exp(scores - new_max)                            # (s_tile, b_blk, 1), <= 1
        den_run[...] = corr * den_run[...] + jnp.sum(p, axis=0)
        # Leading-axis (seq) pooling reduction: pure VALU accumulation.
        acc[...] = acc[...] * corr + jnp.sum(p * m_f32, axis=0)  # (b_blk, D)
        max_run[...] = new_max
        chunk_max[:, pl.ds(s_idx, 1), :] = new_max[:, None, :]

        # Stash the (still unnormalized) p chunk straight into the resident
        # alpha output block: dynamic-SUBLANE slice, seq stays on the lane axis.
        p_bs = p[..., 0].T                                       # (b_blk, s_tile)
        alpha_ref[:, pl.ds(s_idx, 1), :] = p_bs[:, None, :].astype(alpha_ref.dtype)

        @pl.when(s_idx == n_seq - 1)
        def _finalize():
            final_max = max_run[...]                             # (b_blk, 1)
            inv_den = 1.0 / den_run[...]                         # exact: one tiny vector
            pool_ref[...] = (acc[...] * inv_den).astype(pool_ref.dtype)
            # One vectorized VALU rescale of all stored chunks:
            #   alpha = p_chunk * exp(chunk_max - final_max) / den
            scale = (jnp.exp(chunk_max[...] - final_max[:, None, :])
                     * inv_den[:, None, :])                      # (b_blk, n_seq, 1)
            alpha_ref[...] = (alpha_ref[...].astype(jnp.float32) * scale
                              ).astype(alpha_ref.dtype)
            # TODO(synk): for bf16 alpha outputs, stage p in an f32 scratch to
            # avoid double rounding of the stored chunks.

    return kernel


@functools.partial(jax.jit, static_argnames=("batch_tile", "seq_tile"))
def simple_attention(M, w, *, batch_tile=None, seq_tile=None):
    """M: (seq_len, batch, dim); w: (1, dim) = nn.Linear(dim, 1, bias=False).weight.

    Returns (attn_pool (batch, dim), alpha (batch, 1, seq)) matching PyTorch.
    """
    S, B, D = M.shape
    b_blk, s_tile = _pick_tiles(S, B, D, _VMEM_LIMIT, batch_tile, seq_tile)
    n_seq = S // s_tile
    use_mxu = (b_blk % 8 == 0)
    # Hand w to the kernel in the orientation its score path consumes, so no
    # in-kernel relayout of the weight is needed.
    w_in = w.reshape(D, 1) if use_mxu else w.reshape(1, D)

    pool, alpha_chunks = pl.pallas_call(
        _make_kernel(s_tile, n_seq, use_mxu),
        out_shape=(
            jax.ShapeDtypeStruct((B, D), M.dtype),                # attn_pool
            jax.ShapeDtypeStruct((B, n_seq, s_tile), M.dtype),    # alpha, chunked (== (B, S))
        ),
        grid=(B // b_blk, n_seq),
        in_specs=[
            pl.BlockSpec((s_tile, b_blk, D), lambda b, s: (s, b, 0)),   # M, native layout
            pl.BlockSpec(w_in.shape, lambda b, s: (0, 0)),              # weight
        ],
        out_specs=(
            pl.BlockSpec((b_blk, D), lambda b, s: (b, 0)),
            pl.BlockSpec((b_blk, n_seq, s_tile), lambda b, s: (b, 0, 0)),
        ),
        scratch_shapes=[
            pltpu.VMEM((b_blk, 1), jnp.float32),          # running max
            pltpu.VMEM((b_blk, 1), jnp.float32),          # running denominator
            pltpu.VMEM((b_blk, n_seq, 1), jnp.float32),   # per-chunk running max
            pltpu.VMEM((b_blk, D), jnp.float32),          # weighted-sum accumulator
        ],
        compiler_params=pltpu.CompilerParams(
            dimension_semantics=("parallel", "arbitrary"),
            vmem_limit_bytes=_VMEM_LIMIT,
        ),
    )(M, w_in)

    # Free layout plumbing: (B, n_seq, s_tile) -> (B, 1, S).
    return pool, alpha_chunks.reshape(B, 1, S)


if __name__ == "__main__":
    # Small demo shapes: batch=16 exercises the MXU score path (b_blk=8) and a
    # 2-wide parallel batch grid axis; seq_tile=8 forces the multi-chunk online
    # softmax + finalize-rescale path even at demo sizes.
    seq_len, batch, input_dim = 16, 16, 32

    key = jax.random.PRNGKey(0)
    k_m, k_w = jax.random.split(key)

    # Input M -> (seq_len, batch, vector), matching the PyTorch forward.
    M = jax.random.normal(k_m, (seq_len, batch, input_dim), dtype=jnp.float32)

    # Deterministic stand-in for nn.Linear(input_dim, 1, bias=False).weight, shape (1, dim).
    bound = 1.0 / (input_dim ** 0.5)
    w = jax.random.uniform(k_w, (1, input_dim), dtype=jnp.float32,
                           minval=-bound, maxval=bound)

    attn_pool, alpha = simple_attention(M, w, seq_tile=8)
    jax.block_until_ready((attn_pool, alpha))

    assert attn_pool.shape == (batch, input_dim)
    assert alpha.shape == (batch, 1, seq_len)

    # Pure-JAX reference mirroring the PyTorch forward.
    hi = lax.Precision.HIGHEST
    scale = jnp.einsum("sbd,od->sbo", M, w, precision=hi)               # (S, B, 1)
    alpha_expected = jax.nn.softmax(scale, axis=0).transpose(1, 2, 0)   # (B, 1, S)
    pool_expected = jnp.einsum("bos,sbd->bod", alpha_expected, M,
                               precision=hi)[:, 0, :]                   # (B, D)

    assert jnp.allclose(alpha, alpha_expected, rtol=1e-3, atol=1e-4), "alpha mismatch"
    assert jnp.allclose(attn_pool, pool_expected, rtol=1e-3, atol=1e-4), "attn_pool mismatch"

    print("KERNEL_OK")
</pallas_src>

<mosaic_0001>
module attributes {stable_mosaic.version = 11 : i64} {
  func.func @kernel(%arg0: i32, %arg1: i32, %arg2: memref<8x8x32xf32, #tpu.memory_space<vmem>>, %arg3: memref<32x1xf32, #tpu.memory_space<vmem>>, %arg4: memref<8x32xf32, #tpu.memory_space<vmem>>, %arg5: memref<8x2x8xf32, #tpu.memory_space<vmem>>, %arg6: memref<8x1xf32, #tpu.memory_space<vmem>>, %arg7: memref<8x1xf32, #tpu.memory_space<vmem>>, %arg8: memref<8x2x1xf32, #tpu.memory_space<vmem>>, %arg9: memref<8x32xf32, #tpu.memory_space<vmem>>) attributes {dimension_semantics = [#tpu.dimension_semantics<parallel>, #tpu.dimension_semantics<arbitrary>], iteration_bounds = array<i64: 2, 2>, scalar_prefetch = 0 : i64, scratch_operands = 4 : i64, tpu.core_type = #tpu.core_type<tc>, window_params = [{transform_indices = @transform_0, window_bounds = array<i64: 8, 8, 32>}, {pipeline_mode = #tpu.pipeline_mode<synchronous>, transform_indices = @transform_1, window_bounds = array<i64: 32, 1>}, {transform_indices = @transform_2, window_bounds = array<i64: 8, 32>}, {transform_indices = @transform_3, window_bounds = array<i64: 8, 2, 8>}]} {
    %c0_i32 = arith.constant 0 : i32
    %0 = arith.cmpi eq, %arg1, %c0_i32 : i32
    %1 = arith.extui %0 : i1 to i32
    %c0_i32_0 = arith.constant 0 : i32
    %2 = arith.cmpi ne, %1, %c0_i32_0 : i32
    scf.if %2 {
      %cst_27 = arith.constant 0xFF800000 : f32
      %43 = vector.broadcast %cst_27 : f32 to vector<8x1xf32>
      %c0_28 = arith.constant 0 : index
      %c0_29 = arith.constant 0 : index
      %44 = vector.load %arg6[%c0_28, %c0_29] : memref<8x1xf32, #tpu.memory_space<vmem>>, vector<8x1xf32>
      tpu.vector_store %arg6[%c0_28, %c0_29], %43 {strides = array<i32>} : memref<8x1xf32, #tpu.memory_space<vmem>>, vector<8x1xf32>,
      %cst_30 = arith.constant 0.000000e+00 : f32
      %45 = vector.broadcast %cst_30 : f32 to vector<8x1xf32>
      %c0_31 = arith.constant 0 : index
      %c0_32 = arith.constant 0 : index
      %46 = vector.load %arg7[%c0_31, %c0_32] : memref<8x1xf32, #tpu.memory_space<vmem>>, vector<8x1xf32>
      tpu.vector_store %arg7[%c0_31, %c0_32], %45 {strides = array<i32>} : memref<8x1xf32, #tpu.memory_space<vmem>>, vector<8x1xf32>,
      %cst_33 = arith.constant 0.000000e+00 : f32
      %47 = vector.broadcast %cst_33 : f32 to vector<8x32xf32>
      %c0_34 = arith.constant 0 : index
      %c0_35 = arith.constant 0 : index
      %48 = vector.load %arg9[%c0_34, %c0_35] : memref<8x32xf32, #tpu.memory_space<vmem>>, vector<8x32xf32>
      tpu.vector_store %arg9[%c0_34, %c0_35], %47 {strides = array<i32>} : memref<8x32xf32, #tpu.memory_space<vmem>>, vector<8x32xf32>,
    } else {
    }
    %c0 = arith.constant 0 : index
    %c0_1 = arith.constant 0 : index
    %c0_2 = arith.constant 0 : index
    %3 = vector.load %arg2[%c0, %c0_1, %c0_2] : memref<8x8x32xf32, #tpu.memory_space<vmem>>, vector<8x8x32xf32>
    %4 = vector.shape_cast %3 : vector<8x8x32xf32> to vector<64x32xf32>
    %c0_3 = arith.constant 0 : index
    %c0_4 = arith.constant 0 : index
    %5 = vector.load %arg3[%c0_3, %c0_4] : memref<32x1xf32, #tpu.memory_space<vmem>>, vector<32x1xf32>
    %cst = arith.constant dense<0.000000e+00> : vector<64x1xf32>
    %6 = tpu.matmul %4, %5, %cst {dimension_numbers = #tpu.dot_dimension_numbers<[1], [0], [0], [1], [0, 0, 1, 1], [], []>, precision = #tpu.contract_precision<fp32>} : vector<64x32xf32>, vector<32x1xf32>, vector<64x1xf32> -> vector<64x1xf32>
    %7 = vector.shape_cast %6 : vector<64x1xf32> to vector<8x8x1xf32>
    %cst_5 = arith.constant dense<0xFF800000> : vector<8x1xf32>
    %8 = vector.multi_reduction <maximumf>, %7, %cst_5 [0] : vector<8x8x1xf32> to vector<8x1xf32>
    %c0_6 = arith.constant 0 : index
    %c0_7 = arith.constant 0 : index
    %9 = vector.load %arg6[%c0_6, %c0_7] : memref<8x1xf32, #tpu.memory_space<vmem>>, vector<8x1xf32>
    %10 = arith.maximumf %9, %8 : vector<8x1xf32>
    %c0_8 = arith.constant 0 : index
    %c0_9 = arith.constant 0 : index
    %11 = vector.load %arg6[%c0_8, %c0_9] : memref<8x1xf32, #tpu.memory_space<vmem>>, vector<8x1xf32>
    %12 = arith.subf %11, %10 : vector<8x1xf32>
    %13 = math.exp %12 : vector<8x1xf32>
    %14 = vector.shape_cast %10 : vector<8x1xf32> to vector<1x8x1xf32>
    %15 = vector.broadcast %14 : vector<1x8x1xf32> to vector<8x8x1xf32>
    %16 = arith.subf %7, %15 : vector<8x8x1xf32>
    %17 = math.exp %16 : vector<8x8x1xf32>
    %c0_10 = arith.constant 0 : index
    %c0_11 = arith.constant 0 : index
    %18 = vector.load %arg7[%c0_10, %c0_11] : memref<8x1xf32, #tpu.memory_space<vmem>>, vector<8x1xf32>
    %19 = arith.mulf %13, %18 : vector<8x1xf32>
    %cst_12 = arith.constant dense<0.000000e+00> : vector<8x1xf32>
    %20 = vector.multi_reduction <add>, %17, %cst_12 [0] : vector<8x8x1xf32> to vector<8x1xf32>
    %21 = arith.addf %19, %20 : vector<8x1xf32>
    %c0_13 = arith.constant 0 : index
    %c0_14 = arith.constant 0 : index
    %22 = vector.load %arg7[%c0_13, %c0_14] : memref<8x1xf32, #tpu.memory_space<vmem>>, vector<8x1xf32>
    tpu.vector_store %arg7[%c0_13, %c0_14], %21 {strides = array<i32>} : memref<8x1xf32, #tpu.memory_space<vmem>>, vector<8x1xf32>,
    %c0_15 = arith.constant 0 : index
    %c0_16 = arith.constant 0 : index
    %23 = vector.load %arg9[%c0_15, %c0_16] : memref<8x32xf32, #tpu.memory_space<vmem>>, vector<8x32xf32>
    %24 = vector.broadcast %13 : vector<8x1xf32> to vector<8x32xf32>
    %25 = arith.mulf %23, %24 : vector<8x32xf32>
    %26 = vector.broadcast %17 : vector<8x8x1xf32> to vector<8x8x32xf32>
    %27 = arith.mulf %26, %3 : vector<8x8x32xf32>
    %cst_17 = arith.constant dense<0.000000e+00> : vector<8x32xf32>
    %28 = vector.multi_reduction <add>, %27, %cst_17 [0] : vector<8x8x32xf32> to vector<8x32xf32>
    %29 = arith.addf %25, %28 : vector<8x32xf32>
    %c0_18 = arith.constant 0 : index
    %c0_19 = arith.constant 0 : index
    %30 = vector.load %arg9[%c0_18, %c0_19] : memref<8x32xf32, #tpu.memory_space<vmem>>, vector<8x32xf32>
    tpu.vector_store %arg9[%c0_18, %c0_19], %29 {strides = array<i32>} : memref<8x32xf32, #tpu.memory_space<vmem>>, vector<8x32xf32>,
    %c0_20 = arith.constant 0 : index
    %c0_21 = arith.constant 0 : index
    %31 = vector.load %arg6[%c0_20, %c0_21] : memref<8x1xf32, #tpu.memory_space<vmem>>, vector<8x1xf32>
    tpu.vector_store %arg6[%c0_20, %c0_21], %10 {strides = array<i32>} : memref<8x1xf32, #tpu.memory_space<vmem>>, vector<8x1xf32>,
    %32 = vector.shape_cast %10 : vector<8x1xf32> to vector<8x1x1xf32>
    %c0_22 = arith.constant 0 : index
    %33 = arith.index_cast %arg1 : i32 to index
    %c0_23 = arith.constant 0 : index
    %34 = vector.load %arg8[%c0_22, %33, %c0_23] : memref<8x2x1xf32, #tpu.memory_space<vmem>>, vector<8x1x1xf32>
    tpu.vector_store %arg8[%c0_22, %33, %c0_23], %32 {strides = array<i32>} : memref<8x2x1xf32, #tpu.memory_space<vmem>>, vector<8x1x1xf32>,
    %35 = vector.shape_cast %17 : vector<8x8x1xf32> to vector<8x8xf32>
    %36 = tpu.transpose %35, [1, 0] : vector<8x8xf32> -> vector<8x8xf32>
    %37 = vector.shape_cast %36 : vector<8x8xf32> to vector<8x1x8xf32>
    %c0_24 = arith.constant 0 : index
    %38 = arith.index_cast %arg1 : i32 to index
    %c0_25 = arith.constant 0 : index
    %39 = vector.load %arg5[%c0_24, %38, %c0_25] : memref<8x2x8xf32, #tpu.memory_space<vmem>>, vector<8x1x8xf32>
    tpu.vector_store %arg5[%c0_24, %38, %c0_25], %37 {strides = array<i32>} : memref<8x2x8xf32, #tpu.memory_space<vmem>>, vector<8x1x8xf32>,
    %c1_i32 = arith.constant 1 : i32
    %40 = arith.cmpi eq, %arg1, %c1_i32 : i32
    %41 = arith.extui %40 : i1 to i32
    %c0_i32_26 = arith.constant 0 : i32
    %42 = arith.cmpi ne, %41, %c0_i32_26 : i32
    scf.if %42 {
      %c0_27 = arith.constant 0 : index
      %c0_28 = arith.constant 0 : index
      %43 = vector.load %arg6[%c0_27, %c0_28] : memref<8x1xf32, #tpu.memory_space<vmem>>, vector<8x1xf32>
      %c0_29 = arith.constant 0 : index
      %c0_30 = arith.constant 0 : index
      %44 = vector.load %arg7[%c0_29, %c0_30] : memref<8x1xf32, #tpu.memory_space<vmem>>, vector<8x1xf32>
      %cst_31 = arith.constant 1.000000e+00 : f32
      %45 = vector.broadcast %cst_31 : f32 to vector<8x1xf32>
      %46 = arith.divf %45, %44 : vector<8x1xf32>
      %c0_32 = arith.constant 0 : index
      %c0_33 = arith.constant 0 : index
      %47 = vector.load %arg9[%c0_32, %c0_33] : memref<8x32xf32, #tpu.memory_space<vmem>>, vector<8x32xf32>
      %48 = vector.broadcast %46 : vector<8x1xf32> to vector<8x32xf32>
      %49 = arith.mulf %47, %48 : vector<8x32xf32>
      %c0_34 = arith.constant 0 : index
      %c0_35 = arith.constant 0 : index
      %50 = vector.load %arg4[%c0_34, %c0_35] : memref<8x32xf32, #tpu.memory_space<vmem>>, vector<8x32xf32>
      tpu.vector_store %arg4[%c0_34, %c0_35], %49 {strides = array<i32>} : memref<8x32xf32, #tpu.memory_space<vmem>>, vector<8x32xf32>,
      %c0_36 = arith.constant 0 : index
      %c0_37 = arith.constant 0 : index
      %c0_38 = arith.constant 0 : index
      %51 = vector.load %arg8[%c0_36, %c0_37, %c0_38] : memref<8x2x1xf32, #tpu.memory_space<vmem>>, vector<8x2x1xf32>
      %52 = vector.shape_cast %43 : vector<8x1xf32> to vector<8x1x1xf32>
      %53 = vector.broadcast %52 : vector<8x1x1xf32> to vector<8x2x1xf32>
      %54 = arith.subf %51, %53 : vector<8x2x1xf32>
      %55 = math.exp %54 : vector<8x2x1xf32>
      %56 = vector.shape_cast %46 : vector<8x1xf32> to vector<8x1x1xf32>
      %57 = vector.broadcast %56 : vector<8x1x1xf32> to vector<8x2x1xf32>
      %58 = arith.mulf %55, %57 : vector<8x2x1xf32>
      %c0_39 = arith.constant 0 : index
      %c0_40 = arith.constant 0 : index
      %c0_41 = arith.constant 0 : index
      %59 = vector.load %arg5[%c0_39, %c0_40, %c0_41] : memref<8x2x8xf32, #tpu.memory_space<vmem>>, vector<8x2x8xf32>
      %60 = vector.broadcast %58 : vector<8x2x1xf32> to vector<8x2x8xf32>
      %61 = arith.mulf %59, %60 : vector<8x2x8xf32>
      %c0_42 = arith.constant 0 : index
      %c0_43 = arith.constant 0 : index
      %c0_44 = arith.constant 0 : index
      %62 = vector.load %arg5[%c0_42, %c0_43, %c0_44] : memref<8x2x8xf32, #tpu.memory_space<vmem>>, vector<8x2x8xf32>
      tpu.vector_store %arg5[%c0_42, %c0_43, %c0_44], %61 {strides = array<i32>} : memref<8x2x8xf32, #tpu.memory_space<vmem>>, vector<8x2x8xf32>,
    } else {
    }
    return
  }
  func.func @transform_0(%arg0: i32, %arg1: i32) -> (i32, i32, i32) {
    %c0_i32 = arith.constant 0 : i32
    %c0_i32_0 = arith.constant 0 : i32
    return %arg1, %arg0, %c0_i32 : i32, i32, i32
  }
  func.func @transform_1(%arg0: i32, %arg1: i32) -> (i32, i32) {
    %c0_i32 = arith.constant 0 : i32
    %c0_i32_0 = arith.constant 0 : i32
    %c0_i32_1 = arith.constant 0 : i32
    return %c0_i32, %c0_i32_0 : i32, i32
  }
  func.func @transform_2(%arg0: i32, %arg1: i32) -> (i32, i32) {
    %c0_i32 = arith.constant 0 : i32
    %c0_i32_0 = arith.constant 0 : i32
    return %arg0, %c0_i32 : i32, i32
  }
  func.func @transform_3(%arg0: i32, %arg1: i32) -> (i32, i32, i32) {
    %c0_i32 = arith.constant 0 : i32
    %c0_i32_0 = arith.constant 0 : i32
    %c0_i32_1 = arith.constant 0 : i32
    return %arg0, %c0_i32, %c0_i32_0 : i32, i32, i32
  }
}

</mosaic_0001>

<llo_original>
// kernel: simple_attention.1
$region0: #{simple_attention.1}
  #allocation0 [shape = 'u32[]', space=smem, size = 0x4, offset = 0x4, fixed_abs, tag = 'smem constant byte address 0x4 - core index']
  #allocation1 [shape = 'u32[144,128]{1,0:T(1,128)}', space=vmem, size = 0x12000, scoped, tag = 'internal scratch']
  #allocation2 [shape = 'f32[8,1]{1,0:T(8,128)}', space=vmem, size = 0x1000, scoped, tag = 'scratch operand']
  #allocation3 [shape = 'f32[8,1]{1,0:T(8,128)}', space=vmem, size = 0x1000, scoped, tag = 'scratch operand']
  #allocation4 [shape = 'f32[8,2,1]{2,1,0:T(2,128)}', space=vmem, size = 0x2000, scoped, tag = 'scratch operand']
  #allocation5 [shape = 'f32[8,32]{1,0:T(8,128)}', space=vmem, size = 0x1000, scoped, tag = 'scratch operand']
  %s0 = inlined_call_operand.hbm [shape: f32[16,16,32], index: 0, kind: input, shape index: {}]
  %s1 = inlined_call_operand.vmem [shape: f32[32,1], index: 1, kind: input, shape index: {}]
  %s2 = inlined_call_operand.hbm [shape: f32[16,32], index: 2, kind: output, shape index: {0}]
  %s3 = inlined_call_operand.vmem [shape: f32[16,2,8], index: 3, kind: output, shape index: {1}]
  %4 = xla_tuple %s2, %s3
  %s5 = sld [smem:[#allocation0]]
  $region61: #{simple_attention.1} parent=0
    _
  %s7 = ssub.s32 1, %s5
  %s8 = scalar_select 0, %s7, %s5
  $region1: #{simple_attention.1} parent=0
    #allocation6 [shape = 'u8[65536]{0}', space=vmem, size = 0x10000, scoped, tag = 'input window, operand 0']
    #allocation7 [shape = 's32[2]{0}', space=sflag, size = 0x8, scoped, tag = 'scoped memory for simple_attention.1']
    #allocation8 [shape = 's32[2]{0}', space=sflag, size = 0x8, scoped, tag = 'scoped memory for simple_attention.1']
    #allocation9 [shape = 'u8[8192]{0}', space=vmem, size = 0x2000, scoped, tag = 'output window, operand 0']
    %9 = vsyncpa [#allocation7], 0
    %s10 = scalar_lea.sflag [#allocation7], 1
    %11 = vsyncpa %s10, 0
    %12 = vsyncpa [#allocation8], 0
    %s13 = scalar_lea.sflag [#allocation8], 1
    %14 = vsyncpa %s13, 0
    loop: start=0, step=1, limit=6
    $region2: #{simple_attention.1} parent=1 // loop_pre_header
      _
    $region3: #{simple_attention.1} parent=1 // loop_header
      %s16 = sphi 0, %s20
      %p17 = scmp.ge.s32.totalorder %s16, 6
      %s23 = sphi 0, %s35
      %s24 = sphi 0, %s31
      %s25 = sphi 0, %s23
      %s26 = sphi 0, %s24
      %s27 = sphi 0, %s25
      %s28 = sphi 0, %s26
      %s40 = sphi 0, %s42
      %s43 = sphi 0, %s40
      %s44 = sphi 0, %s43
      %s60 = sphi 0, %s44
      %s64 = sphi 0, %s64
      %s66 = sphi 0, %s64
      %s67 = sphi 0, %s66
      %s81 = sphi 0, %s67
      %s87 = sphi 0, %s89
      %s90 = sphi 0, %s87
      %s91 = sphi 0, %s90
      %s107 = sphi 0, %s91
      %s113 = sphi 0, %s115
      %s116 = sphi 0, %s113
      %s117 = sphi 0, %s116
      %s133 = sphi 0, %s117
    $region4: #{simple_attention.1} parent=1 // loop_header_branch
      %19 = sbr.rel (%p17) target = $region8
    $region5: #{simple_attention.1} parent=1 // loop_body
      %s21 = ssub.s32 %s16, 1
      %s22 = ssub.s32 %s16, 2
      %s29 = sadd.s32 1, %s24
      %p30 = scmp.ge.s32.totalorder %s29, 2
      %s31 = scalar_select %p30, 0, %s29
      %s32 = sadd.s32 1, %s23
      %s33 = scalar_select %p30, %s32, %s23
      %p34 = scmp.ge.s32.totalorder %s33, 2
      %s35 = scalar_select %p34, 0, %s33
      %s36 = ssub.s32 %s24, %s31
      %s37 = ssub.s32 %s23, %s35
      %s38 = sor.u32 %s36, %s37
      %p39 = scmp.eq.s32.totalorder %s38, 0
      %s41 = sadd.s32 %s40, 1
      %s42 = scalar_select %p39, %s40, %s41
      %p45 = pneg %p39
      %p46 = scmp.eq.s32.totalorder %s16, 3
      %p47 = por %p45, %p46
      %p48 = scmp.ne.s32.totalorder %s40, %s43
      %p49 = scmp.eq.s32.totalorder %s16, 0
      %p50 = por %p48, %p49
      %p51 = scmp.ne.s32.totalorder %s40, %s43
      %p52 = scmp.eq.s32.totalorder %s21, 3
      %p53 = por %p51, %p52
      %p54 = scmp.ne.s32.totalorder %s43, %s44
      %p55 = scmp.eq.s32.totalorder %s21, 0
      %p56 = por %p54, %p55
      %p57 = scmp.ne.s32.totalorder %s43, %s44
      %p58 = scmp.eq.s32.totalorder %s22, 3
      %p59 = por %p57, %p58
      %p61 = scmp.ne.s32.totalorder %s44, %s60
      %p62 = scmp.eq.s32.totalorder %s22, 0
      %p63 = por %p61, %p62
      %s65 = sadd.s32 %s64, 1
      %p68 = scmp.eq.s32.totalorder %s16, 3
      %p69 = scmp.ne.s32.totalorder %s64, %s66
      %p70 = scmp.eq.s32.totalorder %s16, 0
      %p71 = por %p69, %p70
      %p72 = scmp.ne.s32.totalorder %s64, %s66
      %p73 = scmp.eq.s32.totalorder %s21, 3
      %p74 = por %p72, %p73
      %p75 = scmp.ne.s32.totalorder %s66, %s67
      %p76 = scmp.eq.s32.totalorder %s21, 0
      %p77 = por %p75, %p76
      %p78 = scmp.ne.s32.totalorder %s66, %s67
      %p79 = scmp.eq.s32.totalorder %s22, 3
      %p80 = por %p78, %p79
      %p82 = scmp.ne.s32.totalorder %s67, %s81
      %p83 = scmp.eq.s32.totalorder %s22, 0
      %p84 = por %p82, %p83
      %s85 = ssub.s32 %s23, %s35
      %p86 = scmp.eq.s32.totalorder %s85, 0
      %s88 = sadd.s32 %s87, 1
      %s89 = scalar_select %p86, %s87, %s88
      %p92 = pneg %p86
      %p93 = scmp.eq.s32.totalorder %s16, 3
      %p94 = por %p92, %p93
      %p95 = scmp.ne.s32.totalorder %s87, %s90
      %p96 = scmp.eq.s32.totalorder %s16, 0
      %p97 = por %p95, %p96
      %p98 = scmp.ne.s32.totalorder %s87, %s90
      %p99 = scmp.eq.s32.totalorder %s21, 3
      %p100 = por %p98, %p99
      %p101 = scmp.ne.s32.totalorder %s90, %s91
      %p102 = scmp.eq.s32.totalorder %s21, 0
      %p103 = por %p101, %p102
      %p104 = scmp.ne.s32.totalorder %s90, %s91
      %p105 = scmp.eq.s32.totalorder %s22, 3
      %p106 = por %p104, %p105
      %p108 = scmp.ne.s32.totalorder %s91, %s107
      %p109 = scmp.eq.s32.totalorder %s22, 0
      %p110 = por %p108, %p109
      %s111 = ssub.s32 %s23, %s35
      %p112 = scmp.eq.s32.totalorder %s111, 0
      %s114 = sadd.s32 %s113, 1
      %s115 = scalar_select %p112, %s113, %s114
      %p118 = pneg %p112
      %p119 = scmp.eq.s32.totalorder %s16, 3
      %p120 = por %p118, %p119
      %p121 = scmp.ne.s32.totalorder %s113, %s116
      %p122 = scmp.eq.s32.totalorder %s16, 0
      %p123 = por %p121, %p122
      %p124 = scmp.ne.s32.totalorder %s113, %s116
      %p125 = scmp.eq.s32.totalorder %s21, 3
      %p126 = por %p124, %p125
      %p127 = scmp.ne.s32.totalorder %s116, %s117
      %p128 = scmp.eq.s32.totalorder %s21, 0
      %p129 = por %p127, %p128
      %p130 = scmp.ne.s32.totalorder %s116, %s117
      %p131 = scmp.eq.s32.totalorder %s22, 3
      %p132 = por %p130, %p131
      %p134 = scmp.ne.s32.totalorder %s117, %s133
      %p135 = scmp.eq.s32.totalorder %s22, 0
      %p136 = por %p134, %p135
      %p137 = scmp.le.s32.totalorder 1, %s16
      %p138 = scmp.lt.s32.totalorder %s16, 5
      %p139 = pnand %p137, %p138
      %p140 = pneg %p139
      // Predicated region
      $region9: #{simple_attention.1} parent=5 // pred_check
        _
      $region10: #{simple_attention.1} parent=5 // pred_check_branch
        %142 = sbr.rel (%p139) target = $region12
      $region11: #{simple_attention.1} parent=5 // pred_region
        %s143 = ssub.s32 %s16, 1
        // Predicated region
        $region13: #{simple_attention.1} parent=11 // pred_check
          %p144 = pneg %p77
        $region14: #{simple_attention.1} parent=11 // pred_check_branch
          %146 = sbr.rel (%p144) target = $region16
        $region15: #{simple_attention.1} parent=11 // pred_region
          _
        $region16: #{simple_attention.1} parent=11 // pred_fallthru
          _
      $region12: #{simple_attention.1} parent=5 // pred_fallthru
        _
      %p147 = scmp.lt.s32.totalorder %s16, 4
      // Predicated region
      $region17: #{simple_attention.1} parent=5 // pred_check
        %p148 = pneg %p147
      $region18: #{simple_attention.1} parent=5 // pred_check_branch
        %150 = sbr.rel (%p148) target = $region20
      $region19: #{simple_attention.1} parent=5 // pred_region
        // Predicated region
        $region21: #{simple_attention.1} parent=19 // pred_check
          %p151 = pneg %p50
        $region22: #{simple_attention.1} parent=19 // pred_check_branch
          %153 = sbr.rel (%p151) target = $region24
        $region23: #{simple_attention.1} parent=19 // pred_region
          %s154 = sand.u32 %s40, 1
          %s155 = scalar_lea.sflag [#allocation7], %s154
          %s156 = sand.u32 %s40, 1
          %s157 = smul.addr %s156, 64
          %s158 = scalar_lea.vmem [#allocation6], %s157
          %s159 = smul.u32 8, %s24
          %s161 = ssub.s32 1024, 1024
          %162 = vsyncadd %s155, %s161
          %s163 = smul.addr %s159, 2
          %s164 = sadd.s32 %s23, %s163
          %s165 = smul.addr %s164, 128
          %s166 = scalar_lea.hbm %s0, %s165
          %s167 = sshll.u32 %s158, 4
          %s168 = int_to_ptr.vmem [resolvable:$true] %s167
          %173 = dma.hbm_to_vmem [thread:$0]  %s166, 1024, %s168, %s155, 256, 128, 8
        $region24: #{simple_attention.1} parent=19 // pred_fallthru
          _
      $region20: #{simple_attention.1} parent=5 // pred_fallthru
        _
      %p174 = scmp.le.s32.totalorder 1, %s16
      %p175 = scmp.lt.s32.totalorder %s16, 5
      %p176 = pnand %p174, %p175
      %p177 = pneg %p176
      // Predicated region
      $region25: #{simple_attention.1} parent=5 // pred_check
        _
      $region26: #{simple_attention.1} parent=5 // pred_check_branch
        %179 = sbr.rel (%p176) target = $region28
      $region27: #{simple_attention.1} parent=5 // pred_region
        %s180 = ssub.s32 %s16, 1
        %s181 = sand.u32 %s43, 1
        %s182 = scalar_lea.sflag [#allocation7], %s181
        %s183 = sand.u32 %s43, 1
        %s184 = smul.addr %s183, 64
        %s185 = scalar_lea.vmem [#allocation6], %s184
        // Predicated region
        $region29: #{simple_attention.1} parent=27 // pred_check
          %p186 = pneg %p56
        $region30: #{simple_attention.1} parent=27 // pred_check_branch
          %188 = sbr.rel (%p186) target = $region32
        $region31: #{simple_attention.1} parent=27 // pred_region
          %189 = dma.done %s182, 1024
        $region32: #{simple_attention.1} parent=27 // pred_fallthru
          _
        %s190 = sand.u32 %s43, 1
        %s191 = scalar_lea.sflag [#allocation7], %s190
        %s192 = sand.u32 %s43, 1
        %s193 = smul.addr %s192, 64
        %s194 = scalar_lea.vmem [#allocation6], %s193
        %p195 = pneg %p56
        %p196 = pneg %p53
        %p197 = pneg %p77
        %p198 = pneg %p74
        %p199 = pneg %p103
        %p200 = pneg %p100
        %s201 = sand.u32 %s90, 1
        %s202 = scalar_lea.sflag [#allocation8], %s201
        %s203 = sand.u32 %s90, 1
        %s204 = smul.addr %s203, 8
        %s205 = scalar_lea.vmem [#allocation9], %s204
        %p206 = pneg %p129
        %p207 = pneg %p126
        %s208 = smul.u32 8, %s25
        %p209 = scmp.lt.s32.totalorder %s208, 15
        %s210 = scalar_select %p209, %s208, 15
        %s211 = smul.addr %s210, 2
        %s212 = scalar_lea.vmem %s3, %s211
        %s213 = smul.u32 8, %s26
        %s214 = smul.u32 8, %s25
        %p215 = scmp.lt.s32.totalorder %s214, 15
        %s216 = scalar_select %p215, %s214, 15
        %s217 = smul.addr %s216, 2
        %s218 = scalar_lea.vmem %s3, %s217
        %s219 = smul.u32 8, %s25
        %p220 = scmp.eq.s32.totalorder %s26, 0
        // Predicated region
        $region33: #{simple_attention.1} parent=27 // pred_check
          %p221 = pneg %p220
        $region34: #{simple_attention.1} parent=27 // pred_check_branch
          %223 = sbr.rel (%p221) target = $region36
        $region35: #{simple_attention.1} parent=27 // pred_region
          %vm224 = vcmask 7168
          %225 = vst.msk [vmem:[#allocation2] sm:$0xff] %vm224, -inf
          %226 = vst.msk [vmem:[#allocation3] sm:$0xff] %vm224, 0.0
          %vm227 = vcmask 261120
          %228 = vst.msk [vmem:[#allocation5] sm:$0xff] %vm227, 0.0
        $region36: #{simple_attention.1} parent=27 // pred_fallthru
          _
        %v229 = vld [vmem:[%s185] sm:$0xff]
        %v230 = vld [vmem:[%s185 + $0x8] sm:$0xff]
        %v231 = vld [vmem:[%s185 + $0x10] sm:$0xff]
        %v232 = vld [vmem:[%s185 + $0x18] sm:$0xff]
        %v233 = vld [vmem:[%s185 + $0x20] sm:$0xff]
        %v234 = vld [vmem:[%s185 + $0x28] sm:$0xff]
        %v235 = vld [vmem:[%s185 + $0x30] sm:$0xff]
        %v236 = vld [vmem:[%s185 + $0x38] sm:$0xff]
        %v237 = vld [vmem:[%s1] sm:$0xff]
        %v238 = vld [vmem:[%s1 + $0x8] sm:$0xff]
        %v239 = vld [vmem:[%s1 + $0x10] sm:$0xff]
        %v240 = vld [vmem:[%s1 + $0x18] sm:$0xff]
        %vm241 = vcmask 261120
        %v243 = vsel %vm241, %v229, 0
        %v246 = vsel %vm241, %v230, 0
        %v249 = vsel %vm241, %v231, 0
        %v252 = vsel %vm241, %v232, 0
        %v255 = vsel %vm241, %v233, 0
        %v258 = vsel %vm241, %v234, 0
        %v261 = vsel %vm241, %v235, 0
        %v264 = vsel %vm241, %v236, 0
        %266 = vmatprep.subr.mxu0 0.0
        %267 = vmatpush1.msra.mxu0 0.0
        %268 = vmatprep.subr.mxu0 0.0
        %269 = vmatpush1.msra.mxu0 0.0
        %270 = vmatprep.subr.mxu0 0.0
        %271 = vmatpush1.msra.mxu0 0.0
        %272 = vmatprep.subr.mxu0 0.0
        %273 = vmatpush1.msra.mxu0 0.0
        %274 = vmatprep.subr.mxu0 0.0
        %275 = vmatpush1.msra.mxu0 0.0
        %276 = vmatprep.subr.mxu0 0.0
        %277 = vmatpush1.msra.mxu0 0.0
        %278 = vmatprep.subr.mxu0 0.0
        %279 = vmatpush1.msra.mxu0 0.0
        %280 = vmatprep.subr.mxu0 0.0
        %281 = vmatpush1.msra.mxu0 0.0
        %282 = vmatprep.subr.mxu0 0.0
        %283 = vmatpush1.msra.mxu0 0.0
        %284 = vmatprep.subr.mxu0 0.0
        %285 = vmatpush1.msra.mxu0 0.0
        %286 = vmatprep.subr.mxu0 0.0
        %287 = vmatpush1.msra.mxu0 0.0
        %288 = vmatprep.subr.mxu0 0.0
        %289 = vmatpush1.msra.mxu0 0.0
        %290 = vmatprep.subr.mxu0 0.0
        %v291 = vand.u32 %v240, 4294901760
        %292 = vmatpush1.msra.mxu0 %v291
        %293 = vmatprep.subr.mxu0 0.0
        %v294 = vand.u32 %v239, 4294901760
        %295 = vmatpush1.msra.mxu0 %v294
        %296 = vmatprep.subr.mxu0 0.0
        %v297 = vand.u32 %v238, 4294901760
        %298 = vmatpush1.msra.mxu0 %v297
        %299 = vmatprep.subr.mxu0 0.0
        %v300 = vand.u32 %v237, 4294901760
        %301 = vmatpush1.msra.mxu0 %v300
        %302 = vmatprep.subr.mxu0 0.0
        %303 = vmatpush2.msra.mxu0 0.0
        %304 = vmatprep.subr.mxu0 0.0
        %305 = vmatpush2.msra.mxu0 0.0
        %306 = vmatprep.subr.mxu0 0.0
        %307 = vmatpush2.msra.mxu0 0.0
        %308 = vmatprep.subr.mxu0 0.0
        %309 = vmatpush2.msra.mxu0 0.0
        %310 = vmatprep.subr.mxu0 0.0
        %311 = vmatpush2.msra.mxu0 0.0
        %312 = vmatprep.subr.mxu0 0.0
        %313 = vmatpush2.msra.mxu0 0.0
        %314 = vmatprep.subr.mxu0 0.0
        %315 = vmatpush2.msra.mxu0 0.0
        %316 = vmatprep.subr.mxu0 0.0
        %317 = vmatpush2.msra.mxu0 0.0
        %318 = vmatprep.subr.mxu0 0.0
        %319 = vmatpush2.msra.mxu0 0.0
        %320 = vmatprep.subr.mxu0 0.0
        %321 = vmatpush2.msra.mxu0 0.0
        %322 = vmatprep.subr.mxu0 0.0
        %323 = vmatpush2.msra.mxu0 0.0
        %324 = vmatprep.subr.mxu0 0.0
        %325 = vmatpush2.msra.mxu0 0.0
        %326 = vmatprep.subr.mxu0 0.0
        %327 = vmatpush2.msra.mxu0 0.0
        %328 = vmatprep.subr.mxu0 0.0
        %329 = vmatpush2.msra.mxu0 0.0
        %330 = vmatprep.subr.mxu0 0.0
        %331 = vmatpush2.msra.mxu0 0.0
        %332 = vmatprep.subr.mxu0 0.0
        %333 = vmatpush2.msra.mxu0 0.0
        %334 = vmatprep.mubr.f32.mxu0 0.0
        %v335 = vand.u32 %v243, 4294901760
        %v336 = vsub.f32 %v243, %v335
        %v337 = vand.u32 %v336, 4294901760
        %v338 = vsub.f32 %v336, %v337
        %v339 = vand.u32 %v338, 4294901760
        %340 = vmatmul.mubr.f32.gmra.mxu0 %v339
        %v341 = vpop.f32.mrf.mxu0
        %v342 = vadd.f32 0.0, %v341
        %v343 = vpop.f32.mrf.mxu0
        %344 = vmatprep.mubr.f32.mxu0 0.0
        %v345 = vand.u32 %v246, 4294901760
        %v346 = vsub.f32 %v246, %v345
        %v347 = vand.u32 %v346, 4294901760
        %v348 = vsub.f32 %v346, %v347
        %v349 = vand.u32 %v348, 4294901760
        %350 = vmatmul.mubr.f32.gmra.mxu0 %v349
        %v351 = vpop.f32.mrf.mxu0
        %v352 = vadd.f32 0.0, %v351
        %v353 = vpop.f32.mrf.mxu0
        %354 = vmatprep.mubr.f32.mxu0 0.0
        %v355 = vand.u32 %v249, 4294901760
        %v356 = vsub.f32 %v249, %v355
        %v357 = vand.u32 %v356, 4294901760
        %v358 = vsub.f32 %v356, %v357
        %v359 = vand.u32 %v358, 4294901760
        %360 = vmatmul.mubr.f32.gmra.mxu0 %v359
        %v361 = vpop.f32.mrf.mxu0
        %v362 = vadd.f32 0.0, %v361
        %v363 = vpop.f32.mrf.mxu0
        %364 = vmatprep.mubr.f32.mxu0 0.0
        %v365 = vand.u32 %v252, 4294901760
        %v366 = vsub.f32 %v252, %v365
        %v367 = vand.u32 %v366, 4294901760
        %v368 = vsub.f32 %v366, %v367
        %v369 = vand.u32 %v368, 4294901760
        %370 = vmatmul.mubr.f32.gmra.mxu0 %v369
        %v371 = vpop.f32.mrf.mxu0
        %v372 = vadd.f32 0.0, %v371
        %v373 = vpop.f32.mrf.mxu0
        %374 = vmatprep.mubr.f32.mxu0 0.0
        %v375 = vand.u32 %v255, 4294901760
        %v376 = vsub.f32 %v255, %v375
        %v377 = vand.u32 %v376, 4294901760
        %v378 = vsub.f32 %v376, %v377
        %v379 = vand.u32 %v378, 4294901760
        %380 = vmatmul.mubr.f32.gmra.mxu0 %v379
        %v381 = vpop.f32.mrf.mxu0
        %v382 = vadd.f32 0.0, %v381
        %v383 = vpop.f32.mrf.mxu0
        %384 = vmatprep.mubr.f32.mxu0 0.0
        %v385 = vand.u32 %v258, 4294901760
        %v386 = vsub.f32 %v258, %v385
        %v387 = vand.u32 %v386, 4294901760
        %v388 = vsub.f32 %v386, %v387
        %v389 = vand.u32 %v388, 4294901760
        %390 = vmatmul.mubr.f32.gmra.mxu0 %v389
        %v391 = vpop.f32.mrf.mxu0
        %v392 = vadd.f32 0.0, %v391
        %v393 = vpop.f32.mrf.mxu0
        %394 = vmatprep.mubr.f32.mxu0 0.0
        %v395 = vand.u32 %v261, 4294901760
        %v396 = vsub.f32 %v261, %v395
        %v397 = vand.u32 %v396, 4294901760
        %v398 = vsub.f32 %v396, %v397
        %v399 = vand.u32 %v398, 4294901760
        %400 = vmatmul.mubr.f32.gmra.mxu0 %v399
        %v401 = vpop.f32.mrf.mxu0
        %v402 = vadd.f32 0.0, %v401
        %v403 = vpop.f32.mrf.mxu0
        %404 = vmatprep.mubr.f32.mxu0 0.0
        %v405 = vand.u32 %v264, 4294901760
        %v406 = vsub.f32 %v264, %v405
        %v407 = vand.u32 %v406, 4294901760
        %v408 = vsub.f32 %v406, %v407
        %v409 = vand.u32 %v408, 4294901760
        %410 = vmatmul.mubr.f32.gmra.mxu0 %v409
        %v411 = vpop.f32.mrf.mxu0
        %v412 = vadd.f32 0.0, %v411
        %v413 = vpop.f32.mrf.mxu0
        %414 = vdwg.mxu0
        %415 = vmatprep.subr.mxu0 0.0
        %416 = vmatpush1.msra.mxu0 0.0
        %417 = vmatprep.subr.mxu0 0.0
        %418 = vmatpush1.msra.mxu0 0.0
        %419 = vmatprep.subr.mxu0 0.0
        %420 = vmatpush1.msra.mxu0 0.0
        %421 = vmatprep.subr.mxu0 0.0
        %422 = vmatpush1.msra.mxu0 0.0
        %423 = vmatprep.subr.mxu0 0.0
        %424 = vmatpush1.msra.mxu0 0.0
        %425 = vmatprep.subr.mxu0 0.0
        %426 = vmatpush1.msra.mxu0 0.0
        %427 = vmatprep.subr.mxu0 0.0
        %428 = vmatpush1.msra.mxu0 0.0
        %429 = vmatprep.subr.mxu0 0.0
        %430 = vmatpush1.msra.mxu0 0.0
        %431 = vmatprep.subr.mxu0 0.0
        %432 = vmatpush1.msra.mxu0 0.0
        %433 = vmatprep.subr.mxu0 0.0
        %434 = vmatpush1.msra.mxu0 0.0
        %435 = vmatprep.subr.mxu0 0.0
        %436 = vmatpush1.msra.mxu0 0.0
        %437 = vmatprep.subr.mxu0 0.0
        %438 = vmatpush1.msra.mxu0 0.0
        %439 = vmatprep.subr.mxu0 0.0
        %v440 = vand.u32 %v240, 4294901760
        %v441 = vsub.f32 %v240, %v440
        %v442 = vand.u32 %v441, 4294901760
        %v443 = vsub.f32 %v441, %v442
        %v444 = vand.u32 %v443, 4294901760
        %445 = vmatpush1.msra.mxu0 %v444
        %446 = vmatprep.subr.mxu0 0.0
        %v447 = vand.u32 %v239, 4294901760
        %v448 = vsub.f32 %v239, %v447
        %v449 = vand.u32 %v448, 4294901760
        %v450 = vsub.f32 %v448, %v449
        %v451 = vand.u32 %v450, 4294901760
        %452 = vmatpush1.msra.mxu0 %v451
        %453 = vmatprep.subr.mxu0 0.0
        %v454 = vand.u32 %v238, 4294901760
        %v455 = vsub.f32 %v238, %v454
        %v456 = vand.u32 %v455, 4294901760
        %v457 = vsub.f32 %v455, %v456
        %v458 = vand.u32 %v457, 4294901760
        %459 = vmatpush1.msra.mxu0 %v458
        %460 = vmatprep.subr.mxu0 0.0
        %v461 = vand.u32 %v237, 4294901760
        %v462 = vsub.f32 %v237, %v461
        %v463 = vand.u32 %v462, 4294901760
        %v464 = vsub.f32 %v462, %v463
        %v465 = vand.u32 %v464, 4294901760
        %466 = vmatpush1.msra.mxu0 %v465
        %467 = vmatprep.subr.mxu0 0.0
        %468 = vmatpush2.msra.mxu0 0.0
        %469 = vmatprep.subr.mxu0 0.0
        %470 = vmatpush2.msra.mxu0 0.0
        %471 = vmatprep.subr.mxu0 0.0
        %472 = vmatpush2.msra.mxu0 0.0
        %473 = vmatprep.subr.mxu0 0.0
        %474 = vmatpush2.msra.mxu0 0.0
        %475 = vmatprep.subr.mxu0 0.0
        %476 = vmatpush2.msra.mxu0 0.0
        %477 = vmatprep.subr.mxu0 0.0
        %478 = vmatpush2.msra.mxu0 0.0
        %479 = vmatprep.subr.mxu0 0.0
        %480 = vmatpush2.msra.mxu0 0.0
        %481 = vmatprep.subr.mxu0 0.0
        %482 = vmatpush2.msra.mxu0 0.0
        %483 = vmatprep.subr.mxu0 0.0
        %484 = vmatpush2.msra.mxu0 0.0
        %485 = vmatprep.subr.mxu0 0.0
        %486 = vmatpush2.msra.mxu0 0.0
        %487 = vmatprep.subr.mxu0 0.0
        %488 = vmatpush2.msra.mxu0 0.0
        %489 = vmatprep.subr.mxu0 0.0
        %490 = vmatpush2.msra.mxu0 0.0
        %491 = vmatprep.subr.mxu0 0.0
        %492 = vmatpush2.msra.mxu0 0.0
        %493 = vmatprep.subr.mxu0 0.0
        %494 = vmatpush2.msra.mxu0 0.0
        %495 = vmatprep.subr.mxu0 0.0
        %496 = vmatpush2.msra.mxu0 0.0
        %497 = vmatprep.subr.mxu0 0.0
        %498 = vmatpush2.msra.mxu0 0.0
        %499 = vmatprep.mubr.f32.mxu0 0.0
        %v500 = vand.u32 %v243, 4294901760
        %501 = vmatmul.mubr.f32.gmra.mxu0 %v500
        %v502 = vpop.f32.mrf.mxu0
        %v503 = vadd.f32 %v342, %v502
        %v504 = vpop.f32.mrf.mxu0
        %505 = vmatprep.mubr.f32.mxu0 0.0
        %v506 = vand.u32 %v246, 4294901760
        %507 = vmatmul.mubr.f32.gmra.mxu0 %v506
        %v508 = vpop.f32.mrf.mxu0
        %v509 = vadd.f32 %v352, %v508
        %v510 = vpop.f32.mrf.mxu0
        %511 = vmatprep.mubr.f32.mxu0 0.0
        %v512 = vand.u32 %v249, 4294901760
        %513 = vmatmul.mubr.f32.gmra.mxu0 %v512
        %v514 = vpop.f32.mrf.mxu0
        %v515 = vadd.f32 %v362, %v514
        %v516 = vpop.f32.mrf.mxu0
        %517 = vmatprep.mubr.f32.mxu0 0.0
        %v518 = vand.u32 %v252, 4294901760
        %519 = vmatmul.mubr.f32.gmra.mxu0 %v518
        %v520 = vpop.f32.mrf.mxu0
        %v521 = vadd.f32 %v372, %v520
        %v522 = vpop.f32.mrf.mxu0
        %523 = vmatprep.mubr.f32.mxu0 0.0
        %v524 = vand.u32 %v255, 4294901760
        %525 = vmatmul.mubr.f32.gmra.mxu0 %v524
        %v526 = vpop.f32.mrf.mxu0
        %v527 = vadd.f32 %v382, %v526
        %v528 = vpop.f32.mrf.mxu0
        %529 = vmatprep.mubr.f32.mxu0 0.0
        %v530 = vand.u32 %v258, 4294901760
        %531 = vmatmul.mubr.f32.gmra.mxu0 %v530
        %v532 = vpop.f32.mrf.mxu0
        %v533 = vadd.f32 %v392, %v532
        %v534 = vpop.f32.mrf.mxu0
        %535 = vmatprep.mubr.f32.mxu0 0.0
        %v536 = vand.u32 %v261, 4294901760
        %537 = vmatmul.mubr.f32.gmra.mxu0 %v536
        %v538 = vpop.f32.mrf.mxu0
        %v539 = vadd.f32 %v402, %v538
        %v540 = vpop.f32.mrf.mxu0
        %541 = vmatprep.mubr.f32.mxu0 0.0
        %v542 = vand.u32 %v264, 4294901760
        %543 = vmatmul.mubr.f32.gmra.mxu0 %v542
        %v544 = vpop.f32.mrf.mxu0
        %v545 = vadd.f32 %v412, %v544
        %v546 = vpop.f32.mrf.mxu0
        %547 = vdwg.mxu0
        %548 = vmatprep.subr.mxu0 0.0
        %549 = vmatpush1.msra.mxu0 0.0
        %550 = vmatprep.subr.mxu0 0.0
        %551 = vmatpush1.msra.mxu0 0.0
        %552 = vmatprep.subr.mxu0 0.0
        %553 = vmatpush1.msra.mxu0 0.0
        %554 = vmatprep.subr.mxu0 0.0
        %555 = vmatpush1.msra.mxu0 0.0
        %556 = vmatprep.subr.mxu0 0.0
        %557 = vmatpush1.msra.mxu0 0.0
        %558 = vmatprep.subr.mxu0 0.0
        %559 = vmatpush1.msra.mxu0 0.0
        %560 = vmatprep.subr.mxu0 0.0
        %561 = vmatpush1.msra.mxu0 0.0
        %562 = vmatprep.subr.mxu0 0.0
        %563 = vmatpush1.msra.mxu0 0.0
        %564 = vmatprep.subr.mxu0 0.0
        %565 = vmatpush1.msra.mxu0 0.0
        %566 = vmatprep.subr.mxu0 0.0
        %567 = vmatpush1.msra.mxu0 0.0
        %568 = vmatprep.subr.mxu0 0.0
        %569 = vmatpush1.msra.mxu0 0.0
        %570 = vmatprep.subr.mxu0 0.0
        %571 = vmatpush1.msra.mxu0 0.0
        %572 = vmatprep.subr.mxu0 0.0
        %v573 = vand.u32 %v240, 4294901760
        %v574 = vsub.f32 %v240, %v573
        %575 = vmatpush1.msra.mxu0 %v574
        %576 = vmatprep.subr.mxu0 0.0
        %v577 = vand.u32 %v239, 4294901760
        %v578 = vsub.f32 %v239, %v577
        %579 = vmatpush1.msra.mxu0 %v578
        %580 = vmatprep.subr.mxu0 0.0
        %v581 = vand.u32 %v238, 4294901760
        %v582 = vsub.f32 %v238, %v581
        %583 = vmatpush1.msra.mxu0 %v582
        %584 = vmatprep.subr.mxu0 0.0
        %v585 = vand.u32 %v237, 4294901760
        %v586 = vsub.f32 %v237, %v585
        %587 = vmatpush1.msra.mxu0 %v586
        %588 = vmatprep.subr.mxu0 0.0
        %589 = vmatpush2.msra.mxu0 0.0
        %590 = vmatprep.subr.mxu0 0.0
        %591 = vmatpush2.msra.mxu0 0.0
        %592 = vmatprep.subr.mxu0 0.0
        %593 = vmatpush2.msra.mxu0 0.0
        %594 = vmatprep.subr.mxu0 0.0
        %595 = vmatpush2.msra.mxu0 0.0
        %596 = vmatprep.subr.mxu0 0.0
        %597 = vmatpush2.msra.mxu0 0.0
        %598 = vmatprep.subr.mxu0 0.0
        %599 = vmatpush2.msra.mxu0 0.0
        %600 = vmatprep.subr.mxu0 0.0
        %601 = vmatpush2.msra.mxu0 0.0
        %602 = vmatprep.subr.mxu0 0.0
        %603 = vmatpush2.msra.mxu0 0.0
        %604 = vmatprep.subr.mxu0 0.0
        %605 = vmatpush2.msra.mxu0 0.0
        %606 = vmatprep.subr.mxu0 0.0
        %607 = vmatpush2.msra.mxu0 0.0
        %608 = vmatprep.subr.mxu0 0.0
        %609 = vmatpush2.msra.mxu0 0.0
        %610 = vmatprep.subr.mxu0 0.0
        %611 = vmatpush2.msra.mxu0 0.0
        %612 = vmatprep.subr.mxu0 0.0
        %613 = vmatpush2.msra.mxu0 0.0
        %614 = vmatprep.subr.mxu0 0.0
        %615 = vmatpush2.msra.mxu0 0.0
        %616 = vmatprep.subr.mxu0 0.0
        %617 = vmatpush2.msra.mxu0 0.0
        %618 = vmatprep.subr.mxu0 0.0
        %619 = vmatpush2.msra.mxu0 0.0
        %620 = vmatprep.mubr.f32.mxu0 0.0
        %v621 = vand.u32 %v243, 4294901760
        %v622 = vsub.f32 %v243, %v621
        %623 = vmatmul.mubr.f32.gmra.mxu0 %v622
        %v624 = vpop.f32.mrf.mxu0
        %v625 = vadd.f32 %v503, %v624
        %v626 = vpop.f32.mrf.mxu0
        %627 = vmatprep.mubr.f32.mxu0 0.0
        %v628 = vand.u32 %v246, 4294901760
        %v629 = vsub.f32 %v246, %v628
        %630 = vmatmul.mubr.f32.gmra.mxu0 %v629
        %v631 = vpop.f32.mrf.mxu0
        %v632 = vadd.f32 %v509, %v631
        %v633 = vpop.f32.mrf.mxu0
        %634 = vmatprep.mubr.f32.mxu0 0.0
        %v635 = vand.u32 %v249, 4294901760
        %v636 = vsub.f32 %v249, %v635
        %637 = vmatmul.mubr.f32.gmra.mxu0 %v636
        %v638 = vpop.f32.mrf.mxu0
        %v639 = vadd.f32 %v515, %v638
        %v640 = vpop.f32.mrf.mxu0
        %641 = vmatprep.mubr.f32.mxu0 0.0
        %v642 = vand.u32 %v252, 4294901760
        %v643 = vsub.f32 %v252, %v642
        %644 = vmatmul.mubr.f32.gmra.mxu0 %v643
        %v645 = vpop.f32.mrf.mxu0
        %v646 = vadd.f32 %v521, %v645
        %v647 = vpop.f32.mrf.mxu0
        %648 = vmatprep.mubr.f32.mxu0 0.0
        %v649 = vand.u32 %v255, 4294901760
        %v650 = vsub.f32 %v255, %v649
        %651 = vmatmul.mubr.f32.gmra.mxu0 %v650
        %v652 = vpop.f32.mrf.mxu0
        %v653 = vadd.f32 %v527, %v652
        %v654 = vpop.f32.mrf.mxu0
        %655 = vmatprep.mubr.f32.mxu0 0.0
        %v656 = vand.u32 %v258, 4294901760
        %v657 = vsub.f32 %v258, %v656
        %658 = vmatmul.mubr.f32.gmra.mxu0 %v657
        %v659 = vpop.f32.mrf.mxu0
        %v660 = vadd.f32 %v533, %v659
        %v661 = vpop.f32.mrf.mxu0
        %662 = vmatprep.mubr.f32.mxu0 0.0
        %v663 = vand.u32 %v261, 4294901760
        %v664 = vsub.f32 %v261, %v663
        %665 = vmatmul.mubr.f32.gmra.mxu0 %v664
        %v666 = vpop.f32.mrf.mxu0
        %v667 = vadd.f32 %v539, %v666
        %v668 = vpop.f32.mrf.mxu0
        %669 = vmatprep.mubr.f32.mxu0 0.0
        %v670 = vand.u32 %v264, 4294901760
        %v671 = vsub.f32 %v264, %v670
        %672 = vmatmul.mubr.f32.gmra.mxu0 %v671
        %v673 = vpop.f32.mrf.mxu0
        %v674 = vadd.f32 %v545, %v673
        %v675 = vpop.f32.mrf.mxu0
        %676 = vdwg.mxu0
        %677 = vmatprep.subr.mxu0 0.0
        %678 = vmatpush1.msra.mxu0 0.0
        %679 = vmatprep.subr.mxu0 0.0
        %680 = vmatpush1.msra.mxu0 0.0
        %681 = vmatprep.subr.mxu0 0.0
        %682 = vmatpush1.msra.mxu0 0.0
        %683 = vmatprep.subr.mxu0 0.0
        %684 = vmatpush1.msra.mxu0 0.0
        %685 = vmatprep.subr.mxu0 0.0
        %686 = vmatpush1.msra.mxu0 0.0
        %687 = vmatprep.subr.mxu0 0.0
        %688 = vmatpush1.msra.mxu0 0.0
        %689 = vmatprep.subr.mxu0 0.0
        %690 = vmatpush1.msra.mxu0 0.0
        %691 = vmatprep.subr.mxu0 0.0
        %692 = vmatpush1.msra.mxu0 0.0
        %693 = vmatprep.subr.mxu0 0.0
        %694 = vmatpush1.msra.mxu0 0.0
        %695 = vmatprep.subr.mxu0 0.0
        %696 = vmatpush1.msra.mxu0 0.0
        %697 = vmatprep.subr.mxu0 0.0
        %698 = vmatpush1.msra.mxu0 0.0
        %699 = vmatprep.subr.mxu0 0.0
        %700 = vmatpush1.msra.mxu0 0.0
        %701 = vmatprep.subr.mxu0 0.0
        %v702 = vand.u32 %v240, 4294901760
        %703 = vmatpush1.msra.mxu0 %v702
        %704 = vmatprep.subr.mxu0 0.0
        %v705 = vand.u32 %v239, 4294901760
        %706 = vmatpush1.msra.mxu0 %v705
        %707 = vmatprep.subr.mxu0 0.0
        %v708 = vand.u32 %v238, 4294901760
        %709 = vmatpush1.msra.mxu0 %v708
        %710 = vmatprep.subr.mxu0 0.0
        %v711 = vand.u32 %v237, 4294901760
        %712 = vmatpush1.msra.mxu0 %v711
        %713 = vmatprep.subr.mxu0 0.0
        %714 = vmatpush2.msra.mxu0 0.0
        %715 = vmatprep.subr.mxu0 0.0
        %716 = vmatpush2.msra.mxu0 0.0
        %717 = vmatprep.subr.mxu0 0.0
        %718 = vmatpush2.msra.mxu0 0.0
        %719 = vmatprep.subr.mxu0 0.0
        %720 = vmatpush2.msra.mxu0 0.0
        %721 = vmatprep.subr.mxu0 0.0
        %722 = vmatpush2.msra.mxu0 0.0
        %723 = vmatprep.subr.mxu0 0.0
        %724 = vmatpush2.msra.mxu0 0.0
        %725 = vmatprep.subr.mxu0 0.0
        %726 = vmatpush2.msra.mxu0 0.0
        %727 = vmatprep.subr.mxu0 0.0
        %728 = vmatpush2.msra.mxu0 0.0
        %729 = vmatprep.subr.mxu0 0.0
        %730 = vmatpush2.msra.mxu0 0.0
        %731 = vmatprep.subr.mxu0 0.0
        %732 = vmatpush2.msra.mxu0 0.0
        %733 = vmatprep.subr.mxu0 0.0
        %734 = vmatpush2.msra.mxu0 0.0
        %735 = vmatprep.subr.mxu0 0.0
        %736 = vmatpush2.msra.mxu0 0.0
        %737 = vmatprep.subr.mxu0 0.0
        %738 = vmatpush2.msra.mxu0 0.0
        %739 = vmatprep.subr.mxu0 0.0
        %740 = vmatpush2.msra.mxu0 0.0
        %741 = vmatprep.subr.mxu0 0.0
        %742 = vmatpush2.msra.mxu0 0.0
        %743 = vmatprep.subr.mxu0 0.0
        %744 = vmatpush2.msra.mxu0 0.0
        %745 = vmatprep.mubr.f32.mxu0 0.0
        %v746 = vand.u32 %v243, 4294901760
        %v747 = vsub.f32 %v243, %v746
        %v748 = vand.u32 %v747, 4294901760
        %749 = vmatmul.mubr.f32.gmra.mxu0 %v748
        %v750 = vpop.f32.mrf.mxu0
        %v751 = vadd.f32 %v625, %v750
        %v752 = vpop.f32.mrf.mxu0
        %753 = vmatprep.mubr.f32.mxu0 0.0
        %v754 = vand.u32 %v246, 4294901760
        %v755 = vsub.f32 %v246, %v754
        %v756 = vand.u32 %v755, 4294901760
        %757 = vmatmul.mubr.f32.gmra.mxu0 %v756
        %v758 = vpop.f32.mrf.mxu0
        %v759 = vadd.f32 %v632, %v758
        %v760 = vpop.f32.mrf.mxu0
        %761 = vmatprep.mubr.f32.mxu0 0.0
        %v762 = vand.u32 %v249, 4294901760
        %v763 = vsub.f32 %v249, %v762
        %v764 = vand.u32 %v763, 4294901760
        %765 = vmatmul.mubr.f32.gmra.mxu0 %v764
        %v766 = vpop.f32.mrf.mxu0
        %v767 = vadd.f32 %v639, %v766
        %v768 = vpop.f32.mrf.mxu0
        %769 = vmatprep.mubr.f32.mxu0 0.0
        %v770 = vand.u32 %v252, 4294901760
        %v771 = vsub.f32 %v252, %v770
        %v772 = vand.u32 %v771, 4294901760
        %773 = vmatmul.mubr.f32.gmra.mxu0 %v772
        %v774 = vpop.f32.mrf.mxu0
        %v775 = vadd.f32 %v646, %v774
        %v776 = vpop.f32.mrf.mxu0
        %777 = vmatprep.mubr.f32.mxu0 0.0
        %v778 = vand.u32 %v255, 4294901760
        %v779 = vsub.f32 %v255, %v778
        %v780 = vand.u32 %v779, 4294901760
        %781 = vmatmul.mubr.f32.gmra.mxu0 %v780
        %v782 = vpop.f32.mrf.mxu0
        %v783 = vadd.f32 %v653, %v782
        %v784 = vpop.f32.mrf.mxu0
        %785 = vmatprep.mubr.f32.mxu0 0.0
        %v786 = vand.u32 %v258, 4294901760
        %v787 = vsub.f32 %v258, %v786
        %v788 = vand.u32 %v787, 4294901760
        %789 = vmatmul.mubr.f32.gmra.mxu0 %v788
        %v790 = vpop.f32.mrf.mxu0
        %v791 = vadd.f32 %v660, %v790
        %v792 = vpop.f32.mrf.mxu0
        %793 = vmatprep.mubr.f32.mxu0 0.0
        %v794 = vand.u32 %v261, 4294901760
        %v795 = vsub.f32 %v261, %v794
        %v796 = vand.u32 %v795, 4294901760
        %797 = vmatmul.mubr.f32.gmra.mxu0 %v796
        %v798 = vpop.f32.mrf.mxu0
        %v799 = vadd.f32 %v667, %v798
        %v800 = vpop.f32.mrf.mxu0
        %801 = vmatprep.mubr.f32.mxu0 0.0
        %v802 = vand.u32 %v264, 4294901760
        %v803 = vsub.f32 %v264, %v802
        %v804 = vand.u32 %v803, 4294901760
        %805 = vmatmul.mubr.f32.gmra.mxu0 %v804
        %v806 = vpop.f32.mrf.mxu0
        %v807 = vadd.f32 %v674, %v806
        %v808 = vpop.f32.mrf.mxu0
        %809 = vdwg.mxu0
        %810 = vmatprep.subr.mxu0 0.0
        %811 = vmatpush1.msra.mxu0 0.0
        %812 = vmatprep.subr.mxu0 0.0
        %813 = vmatpush1.msra.mxu0 0.0
        %814 = vmatprep.subr.mxu0 0.0
        %815 = vmatpush1.msra.mxu0 0.0
        %816 = vmatprep.subr.mxu0 0.0
        %817 = vmatpush1.msra.mxu0 0.0
        %818 = vmatprep.subr.mxu0 0.0
        %819 = vmatpush1.msra.mxu0 0.0
        %820 = vmatprep.subr.mxu0 0.0
        %821 = vmatpush1.msra.mxu0 0.0
        %822 = vmatprep.subr.mxu0 0.0
        %823 = vmatpush1.msra.mxu0 0.0
        %824 = vmatprep.subr.mxu0 0.0
        %825 = vmatpush1.msra.mxu0 0.0
        %826 = vmatprep.subr.mxu0 0.0
        %827 = vmatpush1.msra.mxu0 0.0
        %828 = vmatprep.subr.mxu0 0.0
        %829 = vmatpush1.msra.mxu0 0.0
        %830 = vmatprep.subr.mxu0 0.0
        %831 = vmatpush1.msra.mxu0 0.0
        %832 = vmatprep.subr.mxu0 0.0
        %833 = vmatpush1.msra.mxu0 0.0
        %834 = vmatprep.subr.mxu0 0.0
        %v835 = vand.u32 %v240, 4294901760
        %v836 = vsub.f32 %v240, %v835
        %v837 = vand.u32 %v836, 4294901760
        %838 = vmatpush1.msra.mxu0 %v837
        %839 = vmatprep.subr.mxu0 0.0
        %v840 = vand.u32 %v239, 4294901760
        %v841 = vsub.f32 %v239, %v840
        %v842 = vand.u32 %v841, 4294901760
        %843 = vmatpush1.msra.mxu0 %v842
        %844 = vmatprep.subr.mxu0 0.0
        %v845 = vand.u32 %v238, 4294901760
        %v846 = vsub.f32 %v238, %v845
        %v847 = vand.u32 %v846, 4294901760
        %848 = vmatpush1.msra.mxu0 %v847
        %849 = vmatprep.subr.mxu0 0.0
        %v850 = vand.u32 %v237, 4294901760
        %v851 = vsub.f32 %v237, %v850
        %v852 = vand.u32 %v851, 4294901760
        %853 = vmatpush1.msra.mxu0 %v852
        %854 = vmatprep.subr.mxu0 0.0
        %855 = vmatpush2.msra.mxu0 0.0
        %856 = vmatprep.subr.mxu0 0.0
        %857 = vmatpush2.msra.mxu0 0.0
        %858 = vmatprep.subr.mxu0 0.0
        %859 = vmatpush2.msra.mxu0 0.0
        %860 = vmatprep.subr.mxu0 0.0
        %861 = vmatpush2.msra.mxu0 0.0
        %862 = vmatprep.subr.mxu0 0.0
        %863 = vmatpush2.msra.mxu0 0.0
        %864 = vmatprep.subr.mxu0 0.0
        %865 = vmatpush2.msra.mxu0 0.0
        %866 = vmatprep.subr.mxu0 0.0
        %867 = vmatpush2.msra.mxu0 0.0
        %868 = vmatprep.subr.mxu0 0.0
        %869 = vmatpush2.msra.mxu0 0.0
        %870 = vmatprep.subr.mxu0 0.0
        %871 = vmatpush2.msra.mxu0 0.0
        %872 = vmatprep.subr.mxu0 0.0
        %873 = vmatpush2.msra.mxu0 0.0
        %874 = vmatprep.subr.mxu0 0.0
        %875 = vmatpush2.msra.mxu0 0.0
        %876 = vmatprep.subr.mxu0 0.0
        %877 = vmatpush2.msra.mxu0 0.0
        %878 = vmatprep.subr.mxu0 0.0
        %879 = vmatpush2.msra.mxu0 0.0
        %880 = vmatprep.subr.mxu0 0.0
        %881 = vmatpush2.msra.mxu0 0.0
        %882 = vmatprep.subr.mxu0 0.0
        %883 = vmatpush2.msra.mxu0 0.0
        %884 = vmatprep.subr.mxu0 0.0
        %885 = vmatpush2.msra.mxu0 0.0
        %886 = vmatprep.mubr.f32.mxu0 0.0
        %v887 = vand.u32 %v243, 4294901760
        %888 = vmatmul.mubr.f32.gmra.mxu0 %v887
        %v889 = vpop.f32.mrf.mxu0
        %v890 = vadd.f32 %v751, %v889
        %v891 = vpop.f32.mrf.mxu0
        %892 = vmatprep.mubr.f32.mxu0 0.0
        %v893 = vand.u32 %v246, 4294901760
        %894 = vmatmul.mubr.f32.gmra.mxu0 %v893
        %v895 = vpop.f32.mrf.mxu0
        %v896 = vadd.f32 %v759, %v895
        %v897 = vpop.f32.mrf.mxu0
        %898 = vmatprep.mubr.f32.mxu0 0.0
        %v899 = vand.u32 %v249, 4294901760
        %900 = vmatmul.mubr.f32.gmra.mxu0 %v899
        %v901 = vpop.f32.mrf.mxu0
        %v902 = vadd.f32 %v767, %v901
        %v903 = vpop.f32.mrf.mxu0
        %904 = vmatprep.mubr.f32.mxu0 0.0
        %v905 = vand.u32 %v252, 4294901760
        %906 = vmatmul.mubr.f32.gmra.mxu0 %v905
        %v907 = vpop.f32.mrf.mxu0
        %v908 = vadd.f32 %v775, %v907
        %v909 = vpop.f32.mrf.mxu0
        %910 = vmatprep.mubr.f32.mxu0 0.0
        %v911 = vand.u32 %v255, 4294901760
        %912 = vmatmul.mubr.f32.gmra.mxu0 %v911
        %v913 = vpop.f32.mrf.mxu0
        %v914 = vadd.f32 %v783, %v913
        %v915 = vpop.f32.mrf.mxu0
        %916 = vmatprep.mubr.f32.mxu0 0.0
        %v917 = vand.u32 %v258, 4294901760
        %918 = vmatmul.mubr.f32.gmra.mxu0 %v917
        %v919 = vpop.f32.mrf.mxu0
        %v920 = vadd.f32 %v791, %v919
        %v921 = vpop.f32.mrf.mxu0
        %922 = vmatprep.mubr.f32.mxu0 0.0
        %v923 = vand.u32 %v261, 4294901760
        %924 = vmatmul.mubr.f32.gmra.mxu0 %v923
        %v925 = vpop.f32.mrf.mxu0
        %v926 = vadd.f32 %v799, %v925
        %v927 = vpop.f32.mrf.mxu0
        %928 = vmatprep.mubr.f32.mxu0 0.0
        %v929 = vand.u32 %v264, 4294901760
        %930 = vmatmul.mubr.f32.gmra.mxu0 %v929
        %v931 = vpop.f32.mrf.mxu0
        %v932 = vadd.f32 %v807, %v931
        %v933 = vpop.f32.mrf.mxu0
        %934 = vdwg.mxu0
        %935 = vmatprep.subr.mxu0 0.0
        %936 = vmatpush1.msra.mxu0 0.0
        %937 = vmatprep.subr.mxu0 0.0
        %938 = vmatpush1.msra.mxu0 0.0
        %939 = vmatprep.subr.mxu0 0.0
        %940 = vmatpush1.msra.mxu0 0.0
        %941 = vmatprep.subr.mxu0 0.0
        %942 = vmatpush1.msra.mxu0 0.0
        %943 = vmatprep.subr.mxu0 0.0
        %944 = vmatpush1.msra.mxu0 0.0
        %945 = vmatprep.subr.mxu0 0.0
        %946 = vmatpush1.msra.mxu0 0.0
        %947 = vmatprep.subr.mxu0 0.0
        %948 = vmatpush1.msra.mxu0 0.0
        %949 = vmatprep.subr.mxu0 0.0
        %950 = vmatpush1.msra.mxu0 0.0
        %951 = vmatprep.subr.mxu0 0.0
        %952 = vmatpush1.msra.mxu0 0.0
        %953 = vmatprep.subr.mxu0 0.0
        %954 = vmatpush1.msra.mxu0 0.0
        %955 = vmatprep.subr.mxu0 0.0
        %956 = vmatpush1.msra.mxu0 0.0
        %957 = vmatprep.subr.mxu0 0.0
        %958 = vmatpush1.msra.mxu0 0.0
        %959 = vmatprep.subr.mxu0 0.0
        %v960 = vand.u32 %v240, 4294901760
        %961 = vmatpush1.msra.mxu0 %v960
        %962 = vmatprep.subr.mxu0 0.0
        %v963 = vand.u32 %v239, 4294901760
        %964 = vmatpush1.msra.mxu0 %v963
        %965 = vmatprep.subr.mxu0 0.0
        %v966 = vand.u32 %v238, 4294901760
        %967 = vmatpush1.msra.mxu0 %v966
        %968 = vmatprep.subr.mxu0 0.0
        %v969 = vand.u32 %v237, 4294901760
        %970 = vmatpush1.msra.mxu0 %v969
        %971 = vmatprep.subr.mxu0 0.0
        %972 = vmatpush2.msra.mxu0 0.0
        %973 = vmatprep.subr.mxu0 0.0
        %974 = vmatpush2.msra.mxu0 0.0
        %975 = vmatprep.subr.mxu0 0.0
        %976 = vmatpush2.msra.mxu0 0.0
        %977 = vmatprep.subr.mxu0 0.0
        %978 = vmatpush2.msra.mxu0 0.0
        %979 = vmatprep.subr.mxu0 0.0
        %980 = vmatpush2.msra.mxu0 0.0
        %981 = vmatprep.subr.mxu0 0.0
        %982 = vmatpush2.msra.mxu0 0.0
        %983 = vmatprep.subr.mxu0 0.0
        %984 = vmatpush2.msra.mxu0 0.0
        %985 = vmatprep.subr.mxu0 0.0
        %986 = vmatpush2.msra.mxu0 0.0
        %987 = vmatprep.subr.mxu0 0.0
        %988 = vmatpush2.msra.mxu0 0.0
        %989 = vmatprep.subr.mxu0 0.0
        %990 = vmatpush2.msra.mxu0 0.0
        %991 = vmatprep.subr.mxu0 0.0
        %992 = vmatpush2.msra.mxu0 0.0
        %993 = vmatprep.subr.mxu0 0.0
        %994 = vmatpush2.msra.mxu0 0.0
        %995 = vmatprep.subr.mxu0 0.0
        %996 = vmatpush2.msra.mxu0 0.0
        %997 = vmatprep.subr.mxu0 0.0
        %998 = vmatpush2.msra.mxu0 0.0
        %999 = vmatprep.subr.mxu0 0.0
        %1000 = vmatpush2.msra.mxu0 0.0
        %1001 = vmatprep.subr.mxu0 0.0
        %1002 = vmatpush2.msra.mxu0 0.0
        %1003 = vmatprep.mubr.f32.mxu0 0.0
        %v1004 = vand.u32 %v243, 4294901760
        %1005 = vmatmul.mubr.f32.gmra.mxu0 %v1004
        %v1006 = vpop.f32.mrf.mxu0
        %v1007 = vadd.f32 %v890, %v1006
        %v1008 = vpop.f32.mrf.mxu0
        %1009 = vmatprep.mubr.f32.mxu0 0.0
        %v1010 = vand.u32 %v246, 4294901760
        %1011 = vmatmul.mubr.f32.gmra.mxu0 %v1010
        %v1012 = vpop.f32.mrf.mxu0
        %v1013 = vadd.f32 %v896, %v1012
        %v1014 = vpop.f32.mrf.mxu0
        %1015 = vmatprep.mubr.f32.mxu0 0.0
        %v1016 = vand.u32 %v249, 4294901760
        %1017 = vmatmul.mubr.f32.gmra.mxu0 %v1016
        %v1018 = vpop.f32.mrf.mxu0
        %v1019 = vadd.f32 %v902, %v1018
        %v1020 = vpop.f32.mrf.mxu0
        %1021 = vmatprep.mubr.f32.mxu0 0.0
        %v1022 = vand.u32 %v252, 4294901760
        %1023 = vmatmul.mubr.f32.gmra.mxu0 %v1022
        %v1024 = vpop.f32.mrf.mxu0
        %v1025 = vadd.f32 %v908, %v1024
        %v1026 = vpop.f32.mrf.mxu0
        %1027 = vmatprep.mubr.f32.mxu0 0.0
        %v1028 = vand.u32 %v255, 4294901760
        %1029 = vmatmul.mubr.f32.gmra.mxu0 %v1028
        %v1030 = vpop.f32.mrf.mxu0
        %v1031 = vadd.f32 %v914, %v1030
        %v1032 = vpop.f32.mrf.mxu0
        %1033 = vmatprep.mubr.f32.mxu0 0.0
        %v1034 = vand.u32 %v258, 4294901760
        %1035 = vmatmul.mubr.f32.gmra.mxu0 %v1034
        %v1036 = vpop.f32.mrf.mxu0
        %v1037 = vadd.f32 %v920, %v1036
        %v1038 = vpop.f32.mrf.mxu0
        %1039 = vmatprep.mubr.f32.mxu0 0.0
        %v1040 = vand.u32 %v261, 4294901760
        %1041 = vmatmul.mubr.f32.gmra.mxu0 %v1040
        %v1042 = vpop.f32.mrf.mxu0
        %v1043 = vadd.f32 %v926, %v1042
        %v1044 = vpop.f32.mrf.mxu0
        %1045 = vmatprep.mubr.f32.mxu0 0.0
        %v1046 = vand.u32 %v264, 4294901760
        %1047 = vmatmul.mubr.f32.gmra.mxu0 %v1046
        %v1048 = vpop.f32.mrf.mxu0
        %v1049 = vadd.f32 %v932, %v1048
        %v1050 = vpop.f32.mrf.mxu0
        %1051 = vdwg.mxu0
        %vm1052 = vcmask 7168
        %v1053 = vsel %vm1052, %v1007, -inf
        %v1054 = vsel %vm1052, %v1013, -inf
        %v1055 = vsel %vm1052, %v1019, -inf
        %v1056 = vsel %vm1052, %v1025, -inf
        %v1057 = vsel %vm1052, %v1031, -inf
        %v1058 = vmax.f32 %v1053, %v1057
        %v1059 = vsel %vm1052, %v1037, -inf
        %v1060 = vmax.f32 %v1054, %v1059
        %v1061 = vsel %vm1052, %v1043, -inf
        %v1062 = vmax.f32 %v1055, %v1061
        %v1063 = vsel %vm1052, %v1049, -inf
        %v1064 = vmax.f32 %v1056, %v1063
        %v1065 = vmax.f32 %v1058, %v1060
        %v1066 = vmax.f32 %v1062, %v1064
        %v1067 = vmax.f32 %v1065, %v1066
        %v1068 = vld [vmem:[#allocation2] sm:$0xff]
        %v1069 = vmax.f32 %v1068, %v1067
        %v1070 = vsub.f32 %v1068, %v1069
        %v1071 = vmul.f32 %v1070, 1.442695
        %v1072 = vpow.pop %v1071
        %v1073 = vsub.f32 %v1007, %v1069
        %v1074 = vsub.f32 %v1013, %v1069
        %v1075 = vsub.f32 %v1019, %v1069
        %v1076 = vsub.f32 %v1025, %v1069
        %v1077 = vsub.f32 %v1031, %v1069
        %v1078 = vsub.f32 %v1037, %v1069
        %v1079 = vsub.f32 %v1043, %v1069
        %v1080 = vsub.f32 %v1049, %v1069
        %v1081 = vmul.f32 %v1073, 1.442695
        %v1082 = vpow.pop %v1081
        %v1083 = vmul.f32 %v1074, 1.442695
        %v1084 = vpow.pop %v1083
        %v1085 = vmul.f32 %v1075, 1.442695
        %v1086 = vpow.pop %v1085
        %v1087 = vmul.f32 %v1076, 1.442695
        %v1088 = vpow.pop %v1087
        %v1089 = vmul.f32 %v1077, 1.442695
        %v1090 = vpow.pop %v1089
        %v1091 = vmul.f32 %v1078, 1.442695
        %v1092 = vpow.pop %v1091
        %v1093 = vmul.f32 %v1079, 1.442695
        %v1094 = vpow.pop %v1093
        %v1095 = vmul.f32 %v1080, 1.442695
        %v1096 = vpow.pop %v1095
        %v1097 = vld [vmem:[#allocation3] sm:$0xff]
        %v1098 = vmul.f32 %v1072, %v1097
        %v1099 = vsel %vm1052, %v1082, 0.0
        %v1100 = vsel %vm1052, %v1084, 0.0
        %v1101 = vadd.f32 %v1099, %v1100
        %v1102 = vsel %vm1052, %v1086, 0.0
        %v1103 = vadd.f32 %v1101, %v1102
        %v1104 = vsel %vm1052, %v1088, 0.0
        %v1105 = vadd.f32 %v1103, %v1104
        %v1106 = vsel %vm1052, %v1090, 0.0
        %v1107 = vadd.f32 %v1105, %v1106
        %v1108 = vsel %vm1052, %v1092, 0.0
        %v1109 = vadd.f32 %v1107, %v1108
        %v1110 = vsel %vm1052, %v1094, 0.0
        %v1111 = vadd.f32 %v1109, %v1110
        %v1112 = vsel %vm1052, %v1096, 0.0
        %v1113 = vadd.f32 %v1111, %v1112
        %v1114 = vadd.f32 %v1098, %v1113
        %1115 = vst.msk [vmem:[#allocation3] sm:$0xff] %vm1052, %v1114
        %v1116 = vld [vmem:[#allocation5] sm:$0xff]
        %1118 = vset.pattern.permute.xlu0 0
        %1119 = vperm.xlu0 %1118, %v1072
        %v1120 = vpop.permute.xlu0 %1119
        %v1122 = vmul.f32 %v1116, %v1120
        %1124 = vset.pattern.permute.xlu0 0
        %1125 = vperm.xlu0 %1124, %v1082
        %v1126 = vpop.permute.xlu0 %1125
        %1129 = vset.pattern.permute.xlu0 0
        %1130 = vperm.xlu0 %1129, %v1084
        %v1131 = vpop.permute.xlu0 %1130
        %1134 = vset.pattern.permute.xlu0 0
        %1135 = vperm.xlu0 %1134, %v1086
        %v1136 = vpop.permute.xlu0 %1135
        %1139 = vset.pattern.permute.xlu0 0
        %1140 = vperm.xlu0 %1139, %v1088
        %v1141 = vpop.permute.xlu0 %1140
        %1144 = vset.pattern.permute.xlu0 0
        %1145 = vperm.xlu0 %1144, %v1090
        %v1146 = vpop.permute.xlu0 %1145
        %1149 = vset.pattern.permute.xlu0 0
        %1150 = vperm.xlu0 %1149, %v1092
        %v1151 = vpop.permute.xlu0 %1150
        %1154 = vset.pattern.permute.xlu0 0
        %1155 = vperm.xlu0 %1154, %v1094
        %v1156 = vpop.permute.xlu0 %1155
        %1159 = vset.pattern.permute.xlu0 0
        %1160 = vperm.xlu0 %1159, %v1096
        %v1161 = vpop.permute.xlu0 %1160
        %v1163 = vmul.f32 %v1126, %v229
        %v1164 = vmul.f32 %v1131, %v230
        %v1165 = vmul.f32 %v1136, %v231
        %v1166 = vmul.f32 %v1141, %v232
        %v1167 = vmul.f32 %v1146, %v233
        %v1168 = vmul.f32 %v1151, %v234
        %v1169 = vmul.f32 %v1156, %v235
        %v1170 = vmul.f32 %v1161, %v236
        %v1171 = vsel %vm241, %v1163, 0.0
        %v1172 = vsel %vm241, %v1164, 0.0
        %v1173 = vadd.f32 %v1171, %v1172
        %v1174 = vsel %vm241, %v1165, 0.0
        %v1175 = vadd.f32 %v1173, %v1174
        %v1176 = vsel %vm241, %v1166, 0.0
        %v1177 = vadd.f32 %v1175, %v1176
        %v1178 = vsel %vm241, %v1167, 0.0
        %v1179 = vadd.f32 %v1177, %v1178
        %v1180 = vsel %vm241, %v1168, 0.0
        %v1181 = vadd.f32 %v1179, %v1180
        %v1182 = vsel %vm241, %v1169, 0.0
        %v1183 = vadd.f32 %v1181, %v1182
        %v1184 = vsel %vm241, %v1170, 0.0
        %v1185 = vadd.f32 %v1183, %v1184
        %v1186 = vadd.f32 %v1122, %v1185
        %1187 = vst.msk [vmem:[#allocation5] sm:$0xff] %vm241, %v1186
        %1188 = vst.msk [vmem:[#allocation2] sm:$0xff] %vm1052, %v1069
        %v1190 = vcombine.high %v1069, %v1069
        %v1192 = vunpack.c.l.s4 1966171168
        %v1193 = vunpack.c.0.s8 %v1192
        %v1194 = vlaneseq
        %v1195 = vshrl.u32 %v1194, 7
        %v1196 = vsub.s32 %v1193, %v1195
        %v1197 = vrot.slane %v1069, %v1196
        %v1199 = vunpack.c.l.s4 1966171168
        %v1200 = vunpack.c.0.s8 %v1199
        %v1201 = vlaneseq
        %v1202 = vshrl.u32 %v1201, 7
        %v1203 = vsub.s32 %v1200, %v1202
        %v1204 = vrot.slane %v1190, %v1203
        %v1205 = vcombine.high %v1197, %v1197
        %v1206 = vcombine.high %v1204, %v1204
        %v1208 = vunpack.c.l.s4 1966171168
        %v1209 = vunpack.c.0.s8 %v1208
        %v1210 = vlaneseq
        %v1211 = vshrl.u32 %v1210, 7
        %v1212 = vsub.s32 %v1209, %v1211
        %v1213 = vrot.slane %v1197, %v1212
        %v1215 = vunpack.c.l.s4 1966171168
        %v1216 = vunpack.c.0.s8 %v1215
        %v1217 = vlaneseq
        %v1218 = vshrl.u32 %v1217, 7
        %v1219 = vsub.s32 %v1216, %v1218
        %v1220 = vrot.slane %v1204, %v1219
        %v1222 = vunpack.c.l.s4 1966171168
        %v1223 = vunpack.c.0.s8 %v1222
        %v1224 = vlaneseq
        %v1225 = vshrl.u32 %v1224, 7
        %v1226 = vsub.s32 %v1223, %v1225
        %v1227 = vrot.slane %v1205, %v1226
        %v1229 = vunpack.c.l.s4 1966171168
        %v1230 = vunpack.c.0.s8 %v1229
        %v1231 = vlaneseq
        %v1232 = vshrl.u32 %v1231, 7
        %v1233 = vsub.s32 %v1230, %v1232
        %v1234 = vrot.slane %v1206, %v1233
        %v1235 = vcombine.high %v1213, %v1213
        %v1236 = vcombine.high %v1220, %v1220
        %v1237 = vcombine.high %v1227, %v1227
        %v1238 = vcombine.high %v1234, %v1234
        %s1247 = scalar_lea.vmem [#allocation4], %s26
        %vm1248 = vcmask 0
        %1249 = vst.msk [vmem:[%s1247] sm:$0x1] %vm1248, %v1213
        %1250 = vst.msk [vmem:[%s1247 + $0x2] sm:$0x1] %vm1248, %v1227
        %1251 = vst.msk [vmem:[%s1247 + $0x4] sm:$0x1] %vm1248, %v1235
        %1252 = vst.msk [vmem:[%s1247 + $0x6] sm:$0x1] %vm1248, %v1237
        %1253 = vst.msk [vmem:[%s1247 + $0x8] sm:$0x1] %vm1248, %v1220
        %1254 = vst.msk [vmem:[%s1247 + $0xa] sm:$0x1] %vm1248, %v1234
        %1255 = vst.msk [vmem:[%s1247 + $0xc] sm:$0x1] %vm1248, %v1236
        %1256 = vst.msk [vmem:[%s1247 + $0xe] sm:$0x1] %vm1248, %v1238
        %v1257 = vlaneseq
        %v1258 = vand.u32 %v1257, 127
        %v1259 = vlaneseq
        %v1260 = vshrl.u32 %v1259, 7
        %v1261 = vsub.s32 %v1258, %v1260
        %v1262 = vrot.slane %v1126, %v1261
        %v1263 = vlaneseq
        %v1264 = vshrl.u32 %v1263, 7
        %v1265 = vsub.s32 %v1258, %v1264
        %v1266 = vrot.slane %v1131, %v1265
        %v1267 = vlaneseq
        %v1268 = vshrl.u32 %v1267, 7
        %v1269 = vsub.s32 %v1258, %v1268
        %v1270 = vrot.slane %v1136, %v1269
        %v1271 = vlaneseq
        %v1272 = vshrl.u32 %v1271, 7
        %v1273 = vsub.s32 %v1258, %v1272
        %v1274 = vrot.slane %v1141, %v1273
        %v1275 = vlaneseq
        %v1276 = vshrl.u32 %v1275, 7
        %v1277 = vsub.s32 %v1258, %v1276
        %v1278 = vrot.slane %v1146, %v1277
        %v1279 = vlaneseq
        %v1280 = vshrl.u32 %v1279, 7
        %v1281 = vsub.s32 %v1258, %v1280
        %v1282 = vrot.slane %v1151, %v1281
        %v1283 = vlaneseq
        %v1284 = vshrl.u32 %v1283, 7
        %v1285 = vsub.s32 %v1258, %v1284
        %v1286 = vrot.slane %v1156, %v1285
        %v1287 = vlaneseq
        %v1288 = vshrl.u32 %v1287, 7
        %v1289 = vsub.s32 %v1258, %v1288
        %v1290 = vrot.slane %v1161, %v1289
        %vm1291 = vcmask 1041409
        %v1292 = vsel %vm1291, %v1266, %v1262
        %vm1293 = vcmask 1042434
        %v1294 = vsel %vm1293, %v1270, %v1292
        %vm1295 = vcmask 1043459
        %v1296 = vsel %vm1295, %v1274, %v1294
        %vm1297 = vcmask 1044484
        %v1298 = vsel %vm1297, %v1278, %v1296
        %vm1299 = vcmask 1045509
        %v1300 = vsel %vm1299, %v1282, %v1298
        %vm1301 = vcmask 1046534
        %v1302 = vsel %vm1301, %v1286, %v1300
        %vm1303 = vcmask 1047559
        %v1304 = vsel %vm1303, %v1290, %v1302
        %1306 = vxpose.xlu0.b32.start [1/16] %v1304, 128
        %1307 = vxpose.xlu0.b32.cont [2/16] 0.0, 128
        %1308 = vxpose.xlu0.b32.cont [3/16] 0.0, 128
        %1309 = vxpose.xlu0.b32.cont [4/16] 0.0, 128
        %1310 = vxpose.xlu0.b32.cont [5/16] 0.0, 128
        %1311 = vxpose.xlu0.b32.cont [6/16] 0.0, 128
        %1312 = vxpose.xlu0.b32.cont [7/16] 0.0, 128
        %1313 = vxpose.xlu0.b32.cont [8/16] 0.0, 128
        %1314 = vxpose.xlu0.b32.cont [9/16] 0.0, 128
        %1315 = vxpose.xlu0.b32.cont [10/16] 0.0, 128
        %1316 = vxpose.xlu0.b32.cont [11/16] 0.0, 128
        %1317 = vxpose.xlu0.b32.cont [12/16] 0.0, 128
        %1318 = vxpose.xlu0.b32.cont [13/16] 0.0, 128
        %1319 = vxpose.xlu0.b32.cont [14/16] 0.0, 128
        %1320 = vxpose.xlu0.b32.cont [15/16] 0.0, 128
        %1321 = vxpose.xlu0.b32.end [16/16] 0.0, 128
        %v1322 = vpop.trf.xlu0
        %v1323 = vpop.trf.xlu0
        %v1324 = vpop.trf.xlu0
        %v1325 = vpop.trf.xlu0
        %v1326 = vpop.trf.xlu0
        %v1327 = vpop.trf.xlu0
        %v1328 = vpop.trf.xlu0
        %v1329 = vpop.trf.xlu0
        %v1330 = vpop.trf.xlu0
        %v1331 = vpop.trf.xlu0
        %v1332 = vpop.trf.xlu0
        %v1333 = vpop.trf.xlu0
        %v1334 = vpop.trf.xlu0
        %v1335 = vpop.trf.xlu0
        %v1336 = vpop.trf.xlu0
        %v1337 = vpop.trf.xlu0
        %v1339 = vcombine.high %v1322, %v1322
        %v1341 = vunpack.c.l.s4 1966171168
        %v1342 = vunpack.c.0.s8 %v1341
        %v1343 = vlaneseq
        %v1344 = vshrl.u32 %v1343, 7
        %v1345 = vsub.s32 %v1342, %v1344
        %v1346 = vrot.slane %v1322, %v1345
        %v1348 = vunpack.c.l.s4 1966171168
        %v1349 = vunpack.c.0.s8 %v1348
        %v1350 = vlaneseq
        %v1351 = vshrl.u32 %v1350, 7
        %v1352 = vsub.s32 %v1349, %v1351
        %v1353 = vrot.slane %v1339, %v1352
        %v1354 = vcombine.high %v1346, %v1346
        %v1355 = vcombine.high %v1353, %v1353
        %v1357 = vunpack.c.l.s4 1966171168
        %v1358 = vunpack.c.0.s8 %v1357
        %v1359 = vlaneseq
        %v1360 = vshrl.u32 %v1359, 7
        %v1361 = vsub.s32 %v1358, %v1360
        %v1362 = vrot.slane %v1346, %v1361
        %v1364 = vunpack.c.l.s4 1966171168
        %v1365 = vunpack.c.0.s8 %v1364
        %v1366 = vlaneseq
        %v1367 = vshrl.u32 %v1366, 7
        %v1368 = vsub.s32 %v1365, %v1367
        %v1369 = vrot.slane %v1353, %v1368
        %v1371 = vunpack.c.l.s4 1966171168
        %v1372 = vunpack.c.0.s8 %v1371
        %v1373 = vlaneseq
        %v1374 = vshrl.u32 %v1373, 7
        %v1375 = vsub.s32 %v1372, %v1374
        %v1376 = vrot.slane %v1354, %v1375
        %v1378 = vunpack.c.l.s4 1966171168
        %v1379 = vunpack.c.0.s8 %v1378
        %v1380 = vlaneseq
        %v1381 = vshrl.u32 %v1380, 7
        %v1382 = vsub.s32 %v1379, %v1381
        %v1383 = vrot.slane %v1355, %v1382
        %v1384 = vcombine.high %v1362, %v1362
        %v1385 = vcombine.high %v1369, %v1369
        %v1386 = vcombine.high %v1376, %v1376
        %v1387 = vcombine.high %v1383, %v1383
        %s1396 = scalar_lea.vmem %s218, %s26
        %vm1397 = vcmask 57344
        %1398 = vst.msk [vmem:[%s1396] sm:$0x1] %vm1397, %v1362
        %1399 = vst.msk [vmem:[%s1396 + $0x2] sm:$0x1] %vm1397, %v1376
        %1400 = vst.msk [vmem:[%s1396 + $0x4] sm:$0x1] %vm1397, %v1384
        %1401 = vst.msk [vmem:[%s1396 + $0x6] sm:$0x1] %vm1397, %v1386
        %1402 = vst.msk [vmem:[%s1396 + $0x8] sm:$0x1] %vm1397, %v1369
        %1403 = vst.msk [vmem:[%s1396 + $0xa] sm:$0x1] %vm1397, %v1383
        %1404 = vst.msk [vmem:[%s1396 + $0xc] sm:$0x1] %vm1397, %v1385
        %1405 = vst.msk [vmem:[%s1396 + $0xe] sm:$0x1] %vm1397, %v1387
        %p1406 = scmp.eq.s32.totalorder %s26, 1
        // Predicated region
        $region37: #{simple_attention.1} parent=27 // pred_check
          %p1407 = pneg %p1406
        $region38: #{simple_attention.1} parent=27 // pred_check_branch
          %1409 = sbr.rel (%p1407) target = $region40
        $region39: #{simple_attention.1} parent=27 // pred_region
          %v1410 = vld [vmem:[#allocation2] sm:$0xff]
          %v1411 = vld [vmem:[#allocation3] sm:$0xff]
          %v1412 = vrcp.pop %v1411
          %v1413 = vmul.f32 1.0, %v1412
          %v1414 = vld [vmem:[#allocation5] sm:$0xff]
          %1416 = vset.pattern.permute.xlu0 0
          %1417 = vperm.xlu0 %1416, %v1413
          %v1418 = vpop.permute.xlu0 %1417
          %v1420 = vmul.f32 %v1414, %v1418
          %1421 = vst.msk [vmem:[%s205] sm:$0xff] %vm241, %v1420
          %v1422 = vld [vmem:[#allocation4] sm:$0x3]
          %v1423 = vld [vmem:[#allocation4 + $0x2] sm:$0x3]
          %v1424 = vld [vmem:[#allocation4 + $0x4] sm:$0x3]
          %v1425 = vld [vmem:[#allocation4 + $0x6] sm:$0x3]
          %v1426 = vld [vmem:[#allocation4 + $0x8] sm:$0x3]
          %v1427 = vld [vmem:[#allocation4 + $0xa] sm:$0x3]
          %v1428 = vld [vmem:[#allocation4 + $0xc] sm:$0x3]
          %v1429 = vld [vmem:[#allocation4 + $0xe] sm:$0x3]
          %v1431 = vcombine.high %v1410, %v1410
          %v1433 = vunpack.c.l.s4 1966171168
          %v1434 = vunpack.c.0.s8 %v1433
          %v1435 = vlaneseq
          %v1436 = vshrl.u32 %v1435, 7
          %v1437 = vsub.s32 %v1434, %v1436
          %v1438 = vrot.slane %v1410, %v1437
          %v1440 = vunpack.c.l.s4 1966171168
          %v1441 = vunpack.c.0.s8 %v1440
          %v1442 = vlaneseq
          %v1443 = vshrl.u32 %v1442, 7
          %v1444 = vsub.s32 %v1441, %v1443
          %v1445 = vrot.slane %v1431, %v1444
          %v1446 = vcombine.high %v1438, %v1438
          %v1447 = vcombine.high %v1445, %v1445
          %v1449 = vunpack.c.l.s4 1966171168
          %v1450 = vunpack.c.0.s8 %v1449
          %v1451 = vlaneseq
          %v1452 = vshrl.u32 %v1451, 7
          %v1453 = vsub.s32 %v1450, %v1452
          %v1454 = vrot.slane %v1438, %v1453
          %v1456 = vunpack.c.l.s4 1966171168
          %v1457 = vunpack.c.0.s8 %v1456
          %v1458 = vlaneseq
          %v1459 = vshrl.u32 %v1458, 7
          %v1460 = vsub.s32 %v1457, %v1459
          %v1461 = vrot.slane %v1445, %v1460
          %v1463 = vunpack.c.l.s4 1966171168
          %v1464 = vunpack.c.0.s8 %v1463
          %v1465 = vlaneseq
          %v1466 = vshrl.u32 %v1465, 7
          %v1467 = vsub.s32 %v1464, %v1466
          %v1468 = vrot.slane %v1446, %v1467
          %v1470 = vunpack.c.l.s4 1966171168
          %v1471 = vunpack.c.0.s8 %v1470
          %v1472 = vlaneseq
          %v1473 = vshrl.u32 %v1472, 7
          %v1474 = vsub.s32 %v1471, %v1473
          %v1475 = vrot.slane %v1447, %v1474
          %v1476 = vcombine.high %v1454, %v1454
          %v1477 = vcombine.high %v1461, %v1461
          %v1478 = vcombine.high %v1468, %v1468
          %v1479 = vcombine.high %v1475, %v1475
          %v1480 = vlaneseq
          %v1481 = vshrl.u32 %v1480, 7
          %v1482 = vsub.s32 0, %v1481
          %v1483 = vrot.slane %v1454, %v1482
          %v1484 = vlaneseq
          %v1485 = vshrl.u32 %v1484, 7
          %v1486 = vsub.s32 0, %v1485
          %v1487 = vrot.slane %v1468, %v1486
          %v1488 = vlaneseq
          %v1489 = vshrl.u32 %v1488, 7
          %v1490 = vsub.s32 0, %v1489
          %v1491 = vrot.slane %v1476, %v1490
          %v1492 = vlaneseq
          %v1493 = vshrl.u32 %v1492, 7
          %v1494 = vsub.s32 0, %v1493
          %v1495 = vrot.slane %v1478, %v1494
          %v1496 = vlaneseq
          %v1497 = vshrl.u32 %v1496, 7
          %v1498 = vsub.s32 0, %v1497
          %v1499 = vrot.slane %v1461, %v1498
          %v1500 = vlaneseq
          %v1501 = vshrl.u32 %v1500, 7
          %v1502 = vsub.s32 0, %v1501
          %v1503 = vrot.slane %v1475, %v1502
          %v1504 = vlaneseq
          %v1505 = vshrl.u32 %v1504, 7
          %v1506 = vsub.s32 0, %v1505
          %v1507 = vrot.slane %v1477, %v1506
          %v1508 = vlaneseq
          %v1509 = vshrl.u32 %v1508, 7
          %v1510 = vsub.s32 0, %v1509
          %v1511 = vrot.slane %v1479, %v1510
          %v1520 = vsub.f32 %v1422, %v1483
          %v1521 = vsub.f32 %v1423, %v1487
          %v1522 = vsub.f32 %v1424, %v1491
          %v1523 = vsub.f32 %v1425, %v1495
          %v1524 = vsub.f32 %v1426, %v1499
          %v1525 = vsub.f32 %v1427, %v1503
          %v1526 = vsub.f32 %v1428, %v1507
          %v1527 = vsub.f32 %v1429, %v1511
          %v1528 = vmul.f32 %v1520, 1.442695
          %v1529 = vpow.pop %v1528
          %v1530 = vmul.f32 %v1521, 1.442695
          %v1531 = vpow.pop %v1530
          %v1532 = vmul.f32 %v1522, 1.442695
          %v1533 = vpow.pop %v1532
          %v1534 = vmul.f32 %v1523, 1.442695
          %v1535 = vpow.pop %v1534
          %v1536 = vmul.f32 %v1524, 1.442695
          %v1537 = vpow.pop %v1536
          %v1538 = vmul.f32 %v1525, 1.442695
          %v1539 = vpow.pop %v1538
          %v1540 = vmul.f32 %v1526, 1.442695
          %v1541 = vpow.pop %v1540
          %v1542 = vmul.f32 %v1527, 1.442695
          %v1543 = vpow.pop %v1542
          %v1544 = vcombine.high %v1413, %v1413
          %v1546 = vunpack.c.l.s4 1966171168
          %v1547 = vunpack.c.0.s8 %v1546
          %v1548 = vlaneseq
          %v1549 = vshrl.u32 %v1548, 7
          %v1550 = vsub.s32 %v1547, %v1549
          %v1551 = vrot.slane %v1413, %v1550
          %v1553 = vunpack.c.l.s4 1966171168
          %v1554 = vunpack.c.0.s8 %v1553
          %v1555 = vlaneseq
          %v1556 = vshrl.u32 %v1555, 7
          %v1557 = vsub.s32 %v1554, %v1556
          %v1558 = vrot.slane %v1544, %v1557
          %v1559 = vcombine.high %v1551, %v1551
          %v1560 = vcombine.high %v1558, %v1558
          %v1562 = vunpack.c.l.s4 1966171168
          %v1563 = vunpack.c.0.s8 %v1562
          %v1564 = vlaneseq
          %v1565 = vshrl.u32 %v1564, 7
          %v1566 = vsub.s32 %v1563, %v1565
          %v1567 = vrot.slane %v1551, %v1566
          %v1569 = vunpack.c.l.s4 1966171168
          %v1570 = vunpack.c.0.s8 %v1569
          %v1571 = vlaneseq
          %v1572 = vshrl.u32 %v1571, 7
          %v1573 = vsub.s32 %v1570, %v1572
          %v1574 = vrot.slane %v1558, %v1573
          %v1576 = vunpack.c.l.s4 1966171168
          %v1577 = vunpack.c.0.s8 %v1576
          %v1578 = vlaneseq
          %v1579 = vshrl.u32 %v1578, 7
          %v1580 = vsub.s32 %v1577, %v1579
          %v1581 = vrot.slane %v1559, %v1580
          %v1583 = vunpack.c.l.s4 1966171168
          %v1584 = vunpack.c.0.s8 %v1583
          %v1585 = vlaneseq
          %v1586 = vshrl.u32 %v1585, 7
          %v1587 = vsub.s32 %v1584, %v1586
          %v1588 = vrot.slane %v1560, %v1587
          %v1589 = vcombine.high %v1567, %v1567
          %v1590 = vcombine.high %v1574, %v1574
          %v1591 = vcombine.high %v1581, %v1581
          %v1592 = vcombine.high %v1588, %v1588
          %v1593 = vlaneseq
          %v1594 = vshrl.u32 %v1593, 7
          %v1595 = vsub.s32 0, %v1594
          %v1596 = vrot.slane %v1567, %v1595
          %v1597 = vlaneseq
          %v1598 = vshrl.u32 %v1597, 7
          %v1599 = vsub.s32 0, %v1598
          %v1600 = vrot.slane %v1581, %v1599
          %v1601 = vlaneseq
          %v1602 = vshrl.u32 %v1601, 7
          %v1603 = vsub.s32 0, %v1602
          %v1604 = vrot.slane %v1589, %v1603
          %v1605 = vlaneseq
          %v1606 = vshrl.u32 %v1605, 7
          %v1607 = vsub.s32 0, %v1606
          %v1608 = vrot.slane %v1591, %v1607
          %v1609 = vlaneseq
          %v1610 = vshrl.u32 %v1609, 7
          %v1611 = vsub.s32 0, %v1610
          %v1612 = vrot.slane %v1574, %v1611
          %v1613 = vlaneseq
          %v1614 = vshrl.u32 %v1613, 7
          %v1615 = vsub.s32 0, %v1614
          %v1616 = vrot.slane %v1588, %v1615
          %v1617 = vlaneseq
          %v1618 = vshrl.u32 %v1617, 7
          %v1619 = vsub.s32 0, %v1618
          %v1620 = vrot.slane %v1590, %v1619
          %v1621 = vlaneseq
          %v1622 = vshrl.u32 %v1621, 7
          %v1623 = vsub.s32 0, %v1622
          %v1624 = vrot.slane %v1592, %v1623
          %v1633 = vmul.f32 %v1529, %v1596
          %v1634 = vmul.f32 %v1531, %v1600
          %v1635 = vmul.f32 %v1533, %v1604
          %v1636 = vmul.f32 %v1535, %v1608
          %v1637 = vmul.f32 %v1537, %v1612
          %v1638 = vmul.f32 %v1539, %v1616
          %v1639 = vmul.f32 %v1541, %v1620
          %v1640 = vmul.f32 %v1543, %v1624
          %v1641 = vld [vmem:[%s218] sm:$0x3]
          %v1642 = vld [vmem:[%s218 + $0x2] sm:$0x3]
          %v1643 = vld [vmem:[%s218 + $0x4] sm:$0x3]
          %v1644 = vld [vmem:[%s218 + $0x6] sm:$0x3]
          %v1645 = vld [vmem:[%s218 + $0x8] sm:$0x3]
          %v1646 = vld [vmem:[%s218 + $0xa] sm:$0x3]
          %v1647 = vld [vmem:[%s218 + $0xc] sm:$0x3]
          %v1648 = vld [vmem:[%s218 + $0xe] sm:$0x3]
          %1650 = vset.pattern.permute.xlu0 0
          %1651 = vperm.xlu0 %1650, %v1633
          %v1652 = vpop.permute.xlu0 %1651
          %1655 = vset.pattern.permute.xlu0 0
          %1656 = vperm.xlu0 %1655, %v1634
          %v1657 = vpop.permute.xlu0 %1656
          %1660 = vset.pattern.permute.xlu0 0
          %1661 = vperm.xlu0 %1660, %v1635
          %v1662 = vpop.permute.xlu0 %1661
          %1665 = vset.pattern.permute.xlu0 0
          %1666 = vperm.xlu0 %1665, %v1636
          %v1667 = vpop.permute.xlu0 %1666
          %1670 = vset.pattern.permute.xlu0 0
          %1671 = vperm.xlu0 %1670, %v1637
          %v1672 = vpop.permute.xlu0 %1671
          %1675 = vset.pattern.permute.xlu0 0
          %1676 = vperm.xlu0 %1675, %v1638
          %v1677 = vpop.permute.xlu0 %1676
          %1680 = vset.pattern.permute.xlu0 0
          %1681 = vperm.xlu0 %1680, %v1639
          %v1682 = vpop.permute.xlu0 %1681
          %1685 = vset.pattern.permute.xlu0 0
          %1686 = vperm.xlu0 %1685, %v1640
          %v1687 = vpop.permute.xlu0 %1686
          %v1689 = vmul.f32 %v1641, %v1652
          %v1690 = vmul.f32 %v1642, %v1657
          %v1691 = vmul.f32 %v1643, %v1662
          %v1692 = vmul.f32 %v1644, %v1667
          %v1693 = vmul.f32 %v1645, %v1672
          %v1694 = vmul.f32 %v1646, %v1677
          %v1695 = vmul.f32 %v1647, %v1682
          %v1696 = vmul.f32 %v1648, %v1687
          %vm1697 = vcmask 58368
          %1698 = vst.msk [vmem:[%s218] sm:$0x3] %vm1697, %v1689
          %1699 = vst.msk [vmem:[%s218 + $0x2] sm:$0x3] %vm1697, %v1690
          %1700 = vst.msk [vmem:[%s218 + $0x4] sm:$0x3] %vm1697, %v1691
          %1701 = vst.msk [vmem:[%s218 + $0x6] sm:$0x3] %vm1697, %v1692
          %1702 = vst.msk [vmem:[%s218 + $0x8] sm:$0x3] %vm1697, %v1693
          %1703 = vst.msk [vmem:[%s218 + $0xa] sm:$0x3] %vm1697, %v1694
          %1704 = vst.msk [vmem:[%s218 + $0xc] sm:$0x3] %vm1697, %v1695
          %1705 = vst.msk [vmem:[%s218 + $0xe] sm:$0x3] %vm1697, %v1696
        $region40: #{simple_attention.1} parent=27 // pred_fallthru
          _
        %s1706 = sand.u32 %s90, 1
        %s1707 = scalar_lea.sflag [#allocation8], %s1706
        %s1708 = sand.u32 %s90, 1
        %s1709 = smul.addr %s1708, 8
        %s1710 = scalar_lea.vmem [#allocation9], %s1709
        %s1711 = smul.u32 8, %s25
        %p1712 = scmp.lt.s32.totalorder %s1711, 15
        %s1713 = scalar_select %p1712, %s1711, 15
        %s1714 = smul.addr %s1713, 2
        %s1715 = scalar_lea.vmem %s3, %s1714
        // Predicated region
        $region41: #{simple_attention.1} parent=27 // pred_check
          %p1716 = pneg %p100
        $region42: #{simple_attention.1} parent=27 // pred_check_branch
          %1718 = sbr.rel (%p1716) target = $region44
        $region43: #{simple_attention.1} parent=27 // pred_region
          %s1720 = ssub.s32 128, 128
          %1721 = vsyncadd %s1707, %s1720
          %s1722 = smul.addr %s25, 128
          %s1723 = scalar_lea.hbm %s2, %s1722
          %s1725 = sshll.u32 %s1710, 4
          %s1726 = int_to_ptr.vmem [resolvable:$true] %s1725
          %1728 = dma.vmem_to_hbm [thread:$0]  %s1726, 128, %s1723, %s1707
        $region44: #{simple_attention.1} parent=27 // pred_fallthru
          _
        // Predicated region
        $region45: #{simple_attention.1} parent=27 // pred_check
          %p1729 = pneg %p126
        $region46: #{simple_attention.1} parent=27 // pred_check_branch
          %1731 = sbr.rel (%p1729) target = $region48
        $region47: #{simple_attention.1} parent=27 // pred_region
          %s1732 = smul.u32 8, %s25
        $region48: #{simple_attention.1} parent=27 // pred_fallthru
          _
      $region28: #{simple_attention.1} parent=5 // pred_fallthru
        _
      %p1733 = scmp.le.s32.totalorder 2, %s16
      // Predicated region
      $region49: #{simple_attention.1} parent=5 // pred_check
        %p1734 = pneg %p1733
      $region50: #{simple_attention.1} parent=5 // pred_check_branch
        %1736 = sbr.rel (%p1734) target = $region52
      $region51: #{simple_attention.1} parent=5 // pred_region
        %s1737 = ssub.s32 %s16, 2
        // Predicated region
        $region53: #{simple_attention.1} parent=51 // pred_check
          %p1738 = pneg %p106
        $region54: #{simple_attention.1} parent=51 // pred_check_branch
          %1740 = sbr.rel (%p1738) target = $region56
        $region55: #{simple_attention.1} parent=51 // pred_region
          %s1741 = sand.u32 %s91, 1
          %s1742 = scalar_lea.sflag [#allocation8], %s1741
          %s1743 = sand.u32 %s91, 1
          %s1744 = smul.addr %s1743, 8
          %s1745 = scalar_lea.vmem [#allocation9], %s1744
          %1746 = dma.done %s1742, 128
        $region56: #{simple_attention.1} parent=51 // pred_fallthru
          _
        // Predicated region
        $region57: #{simple_attention.1} parent=51 // pred_check
          %p1747 = pneg %p132
        $region58: #{simple_attention.1} parent=51 // pred_check_branch
          %1749 = sbr.rel (%p1747) target = $region60
        $region59: #{simple_attention.1} parent=51 // pred_region
          %s1750 = smul.u32 8, %s27
          %p1751 = scmp.lt.s32.totalorder %s1750, 15
          %s1752 = scalar_select %p1751, %s1750, 15
          %s1753 = smul.addr %s1752, 2
          %s1754 = scalar_lea.vmem %s3, %s1753
        $region60: #{simple_attention.1} parent=51 // pred_fallthru
          _
      $region52: #{simple_attention.1} parent=5 // pred_fallthru
        _
    $region6: #{simple_attention.1} parent=1 // loop_footer
      %s20 = sadd.s32 1, %s16
    $region7: #{simple_attention.1} parent=1 // loop_footer_branch
      %15 = sbr.rel target = $region3
    $region8: #{simple_attention.1} parent=1 // loop_exit
      _
    %1755 = vsyncpa [#allocation7], 1
    %s1756 = scalar_lea.sflag [#allocation7], 1
    %1757 = vsyncpa %s1756, 1
    %1758 = vsyncpa [#allocation8], 1
    %s1759 = scalar_lea.sflag [#allocation8], 1
    %1760 = vsyncpa %s1759, 1

</llo_original>
